<compile_context>
chip_gen: v5e
topology: v5e:2x2
jax: 0.10.0
libtpu: 0.0.40
codegen_flags: <defaults>
</compile_context>

<pallas_src>
import functools
import math

import jax
import jax.numpy as jnp
from jax.experimental import pallas as pl
from jax.experimental.pallas import tpu as pltpu

_SUBLANE = 8
_LANE = 128


def mean_mil_kernel(x_ref, w1_ref, b1_ref, w2_ref, b2_ref, out_ref, acc_ref,
                    *, n_instances, compute_dtype):
    """Grid = (bag blocks, instance chunks).  Accumulates per-bag instance sums.

    x_ref  : (block_b, block_n, D)  instance features for this (bag, chunk) block
    w1_ref : (D, H)                 head Linear weight (transposed, compute_dtype)
    b1_ref : (1, H)                 head Linear bias (f32)
    w2_ref : (H, C_pad)             classifier weight (transposed, lane-padded, /N folded)
    b2_ref : (1, C_pad)             classifier bias (lane-padded, f32)
    out_ref: (block_b, 1, C_pad)    bag-level logits
    acc_ref: (block_b, H) f32       running sum of ReLU(head) over instances
    """
    n_idx = pl.program_id(1)
    n_steps = pl.num_programs(1)

    @pl.when(n_idx == 0)
    def _init():
        acc_ref[...] = jnp.zeros_like(acc_ref)

    tb, tn, d = x_ref.shape
    h_dim = w1_ref.shape[1]

    # Collapse (bag, instance) -> one MXU-friendly matmul.  bf16 cast is a free VPU op.
    # (If block_n % 8 != 0 and tb > 1 this reshape relayouts; the wrapper only picks
    #  such shapes when block_n == N, i.e. small bags, where the copy is negligible.)
    xf = x_ref[...].reshape(tb * tn, d).astype(compute_dtype)

    # head: Linear(in_dim -> 512) + ReLU   (Dropout == identity at inference)
    h = jnp.dot(xf, w1_ref[...], preferred_element_type=jnp.float32) + b1_ref[...]
    h = jnp.maximum(h, 0.0)
    hr = h.reshape(tb, tn, h_dim)

    if n_instances % tn != 0:
        # Tail instance chunk: rows past the true N hold garbage (Pallas boundary
        # reads) and would otherwise contribute ReLU(garbage @ W1 + b1) to the sum.
        inst = jax.lax.broadcasted_iota(jnp.int32, (1, tn, 1), 1) + n_idx * tn
        hr = jnp.where(inst < n_instances, hr, 0.0)

    acc_ref[...] += jnp.sum(hr, axis=1)

    @pl.when(n_idx == n_steps - 1)
    def _finalize():
        # mean over instances commutes with the classifier Linear; 1/N is already
        # folded into w2_ref, so this is sum @ (w2/N) + b2.
        logits = jnp.dot(acc_ref[...], w2_ref[...],
                         preferred_element_type=jnp.float32) + b2_ref[...]
        out_ref[:, 0, :] = logits.astype(out_ref.dtype)


def _vmem_budget_bytes():
    """Generation-aware VMEM budget (~half of physical; v7x only has 64 MiB)."""
    cap = 64 * 1024 * 1024          # conservative fallback (v7x-safe)
    try:
        cap = int(pltpu.get_tpu_info().vmem_capacity_bytes)
    except Exception:
        pass
    return min(cap // 2, 64 * 1024 * 1024)


def _choose_blocks(B, N, D, H, C_pad, compute_itemsize, budget):
    """Pick (block_b, block_n) so block_b*block_n ~ 4096 rows within the VMEM budget."""
    # Fixed VMEM: weights + biases (assume double-buffered worst case) + slack.
    fixed = 2 * (D * H * compute_itemsize + H * 4 + H * C_pad * 4 + C_pad * 4) + (1 << 20)
    avail = max(budget - fixed, 1 << 20)
    # Per flattened (bag, instance) row: x block f32 double-buffered + in-kernel
    # compute_dtype copy + f32 `h` activation + one more H-wide f32 temp.
    per_row = 2 * D * 4 + D * compute_itemsize + 2 * H * 4
    max_rows = max(_SUBLANE, int(avail // per_row))
    # 2048-4096 rows keep the 256x256 MXU busy and amortize the ~0.35us/step overhead.
    rows = min(4096, max_rows)

    if N <= rows:
        block_n = N                                   # whole bag per step, no masking
        block_b = max(1, rows // N)
    else:
        block_b = 1                                   # stream one bag in N-chunks
        block_n = max(_SUBLANE, (rows // _SUBLANE) * _SUBLANE)

    # Keep >= 2 batch blocks whenever possible so the "parallel" axis can be sharded
    # across both v7x TensorCores (a single-step launch idles half the chip).
    if B >= 2:
        block_b = min(block_b, pl.cdiv(B, 2))
    block_b = max(1, min(block_b, B))
    return int(block_b), int(block_n)


def mean_mil_forward(x, w1, b1, w2, b2, *, compute_dtype=jnp.bfloat16,
                     block_b=None, block_n=None):
    """Bag-level logits for MEAN_MIL.  x: (B, N, D) -> (B, C) float32.

    compute_dtype: dtype of the x / W1 matmul operands.  bf16 (default) is MXU-native
    on all TPU generations; accumulation is always f32.  Use jnp.float32 for exact
    PyTorch-matching numerics.
    """
    B, N, D = x.shape
    H = w1.shape[1]
    C = w2.shape[1]
    C_pad = max(_LANE, pl.cdiv(C, _LANE) * _LANE)

    ci = jnp.dtype(compute_dtype).itemsize
    budget = _vmem_budget_bytes()
    auto_b, auto_n = _choose_blocks(B, N, D, H, C_pad, ci, budget)
    if block_b is None:
        block_b = auto_b
    if block_n is None:
        block_n = auto_n
    block_b = int(max(1, min(block_b, B)))
    block_n = int(max(1, min(block_n, N)))

    grid = (pl.cdiv(B, block_b), pl.cdiv(N, block_n))

    # Classifier weight in (H, C) transposed form, zero-padded to 128 lanes, with the
    # 1/N mean folded in.  Biases reshaped to (1, .) for lane-major broadcast.
    w2p = jnp.zeros((H, C_pad), jnp.float32).at[:, :C].set(
        w2.astype(jnp.float32) / float(N))
    b2p = jnp.zeros((1, C_pad), jnp.float32).at[:, :C].set(
        b2.reshape(1, -1).astype(jnp.float32))
    b1r = b1.reshape(1, -1).astype(jnp.float32)
    w1c = w1.astype(compute_dtype)      # tiny (D*H); x itself is cast inside the kernel

    kernel = functools.partial(mean_mil_kernel, n_instances=N,
                               compute_dtype=compute_dtype)

    cost = pl.CostEstimate(
        flops=2 * B * N * D * H + 2 * B * H * C_pad,
        transcendentals=0,
        bytes_accessed=(x.size * x.dtype.itemsize + D * H * ci
                        + H * C_pad * 4 + H * 4 + C_pad * 4 + B * C_pad * 4))

    def run(single_buffer_weights):
        def w_spec(shape):
            kw = {}
            if single_buffer_weights:
                # Constant index_map -> the block never changes; a second buffer is
                # pure VMEM waste.
                kw["pipeline_mode"] = pl.Buffered(buffer_count=1)
            return pl.BlockSpec(shape, lambda b, n: (0,) * len(shape), **kw)

        return pl.pallas_call(
            kernel,
            out_shape=jax.ShapeDtypeStruct((B, 1, C_pad), jnp.float32),
            grid_spec=pltpu.PrefetchScalarGridSpec(
                num_scalar_prefetch=0,
                grid=grid,
                in_specs=[
                    pl.BlockSpec((block_b, block_n, D), lambda b, n: (b, n, 0)),  # x
                    w_spec((D, H)),        # w1 (resident)
                    w_spec((1, H)),        # b1
                    w_spec((H, C_pad)),    # w2 (lane-padded, /N folded)
                    w_spec((1, C_pad)),    # b2
                ],
                out_specs=pl.BlockSpec((block_b, 1, C_pad), lambda b, n: (b, 0, 0)),
                scratch_shapes=[pltpu.VMEM((block_b, H), jnp.float32)],
            ),
            compiler_params=pltpu.CompilerParams(
                dimension_semantics=("parallel", "arbitrary"),
                vmem_limit_bytes=int(budget)),
            cost_estimate=cost,
        )(x, w1c, b1r, w2p, b2p)

    try:
        out = run(True)          # single-buffered weights
    except Exception:
        out = run(False)         # fall back if this JAX build rejects Buffered(1)

    return out[:, 0, :C]


def init_params(key, in_dim=512, hidden=512, num_classes=2):
    """Deterministic xavier-normal weights, zero biases (matches initialize_weights)."""
    k1, k2 = jax.random.split(key)
    std1 = math.sqrt(2.0 / (in_dim + hidden))
    w1 = jax.random.normal(k1, (in_dim, hidden), jnp.float32) * std1
    b1 = jnp.zeros((hidden,), jnp.float32)
    std2 = math.sqrt(2.0 / (hidden + num_classes))
    w2 = jax.random.normal(k2, (hidden, num_classes), jnp.float32) * std2
    b2 = jnp.zeros((num_classes,), jnp.float32)
    return w1, b1, w2, b2


if __name__ == "__main__":
    B, N, in_dim, hidden, num_classes = 2, 8, 512, 512, 2

    key = jax.random.PRNGKey(0)
    kparam, kx = jax.random.split(key)
    w1, b1, w2, b2 = init_params(kparam, in_dim, hidden, num_classes)
    x = jax.random.normal(kx, (B, N, in_dim), jnp.float32)

    # pure-JAX reference (original op order: head -> classifier -> instance mean)
    h_ref = jnp.maximum(x @ w1 + b1, 0.0)
    ref = jnp.mean(h_ref @ w2 + b2, axis=1)

    # default fast path: bf16 matmul operands, f32 accumulation (numerics knob)
    logits = mean_mil_forward(x, w1, b1, w2, b2)
    jax.block_until_ready(logits)
    assert logits.shape == (B, num_classes)
    assert jnp.allclose(logits, ref, atol=5e-2, rtol=5e-2), float(
        jnp.max(jnp.abs(logits - ref)))

    # exact f32 path matches the PyTorch forward tightly
    logits_f32 = mean_mil_forward(x, w1, b1, w2, b2, compute_dtype=jnp.float32)
    jax.block_until_ready(logits_f32)
    assert jnp.allclose(logits_f32, ref, atol=1e-4, rtol=1e-4)

    # TODO(synk): Dropout is identity (inference mode); the optional
    # return_WSI_attn / return_WSI_feature branches of forward() are not implemented.
    print("KERNEL_OK")
</pallas_src>

<mosaic_0001>
module attributes {stable_mosaic.version = 11 : i64} {
  func.func @mean_mil_kernel(%arg0: i32, %arg1: i32, %arg2: memref<1x8x512xf32, #tpu.memory_space<vmem>>, %arg3: memref<512x512xbf16, #tpu.memory_space<vmem>>, %arg4: memref<1x512xf32, #tpu.memory_space<vmem>>, %arg5: memref<512x128xf32, #tpu.memory_space<vmem>>, %arg6: memref<1x128xf32, #tpu.memory_space<vmem>>, %arg7: memref<1x1x128xf32, #tpu.memory_space<vmem>>, %arg8: memref<1x512xf32, #tpu.memory_space<vmem>>) attributes {dimension_semantics = [#tpu.dimension_semantics<parallel>, #tpu.dimension_semantics<arbitrary>], iteration_bounds = array<i64: 2, 1>, scalar_prefetch = 0 : i64, scratch_operands = 1 : i64, tpu.core_type = #tpu.core_type<tc>, window_params = [{transform_indices = @transform_0, window_bounds = array<i64: 1, 8, 512>}, {pipeline_mode = #tpu.pipeline_mode<synchronous>, transform_indices = @transform_1, window_bounds = array<i64: 512, 512>}, {pipeline_mode = #tpu.pipeline_mode<synchronous>, transform_indices = @transform_2, window_bounds = array<i64: 1, 512>}, {pipeline_mode = #tpu.pipeline_mode<synchronous>, transform_indices = @transform_3, window_bounds = array<i64: 512, 128>}, {pipeline_mode = #tpu.pipeline_mode<synchronous>, transform_indices = @transform_4, window_bounds = array<i64: 1, 128>}, {transform_indices = @transform_5, window_bounds = array<i64: 1, 1, 128>}]} {
    %c0_i32 = arith.constant 0 : i32
    %0 = arith.cmpi eq, %arg1, %c0_i32 : i32
    %1 = arith.extui %0 : i1 to i32
    %c0_i32_0 = arith.constant 0 : i32
    %2 = arith.cmpi ne, %1, %c0_i32_0 : i32
    scf.if %2 {
      %cst_15 = arith.constant 0.000000e+00 : f32
      %21 = vector.broadcast %cst_15 : f32 to vector<1x512xf32>
      %c0_16 = arith.constant 0 : index
      %c0_17 = arith.constant 0 : index
      %22 = vector.load %arg8[%c0_16, %c0_17] : memref<1x512xf32, #tpu.memory_space<vmem>>, vector<1x512xf32>
      tpu.vector_store %arg8[%c0_16, %c0_17], %21 {strides = array<i32>} : memref<1x512xf32, #tpu.memory_space<vmem>>, vector<1x512xf32>,
    } else {
    }
    %c0 = arith.constant 0 : index
    %c0_1 = arith.constant 0 : index
    %c0_2 = arith.constant 0 : index
    %3 = vector.load %arg2[%c0, %c0_1, %c0_2] : memref<1x8x512xf32, #tpu.memory_space<vmem>>, vector<1x8x512xf32>
    %4 = vector.shape_cast %3 : vector<1x8x512xf32> to vector<8x512xf32>
    %5 = arith.truncf %4 : vector<8x512xf32> to vector<8x512xbf16>
    %c0_3 = arith.constant 0 : index
    %c0_4 = arith.constant 0 : index
    %6 = vector.load %arg3[%c0_3, %c0_4] : memref<512x512xbf16, #tpu.memory_space<vmem>>, vector<512x512xbf16>
    %cst = arith.constant dense<0.000000e+00> : vector<8x512xf32>
    %7 = tpu.matmul %5, %6, %cst {dimension_numbers = #tpu.dot_dimension_numbers<[1], [0], [0], [1], [0, 0, 1, 1], [], []>} : vector<8x512xbf16>, vector<512x512xbf16>, vector<8x512xf32> -> vector<8x512xf32>
    %c0_5 = arith.constant 0 : index
    %c0_6 = arith.constant 0 : index
    %8 = vector.load %arg4[%c0_5, %c0_6] : memref<1x512xf32, #tpu.memory_space<vmem>>, vector<1x512xf32>
    %9 = vector.broadcast %8 : vector<1x512xf32> to vector<8x512xf32>
    %10 = arith.addf %7, %9 : vector<8x512xf32>
    %cst_7 = arith.constant 0.000000e+00 : f32
    %11 = vector.broadcast %cst_7 : f32 to vector<8x512xf32>
    %12 = arith.maximumf %10, %11 : vector<8x512xf32>
    %13 = vector.shape_cast %12 : vector<8x512xf32> to vector<1x8x512xf32>
    %c0_8 = arith.constant 0 : index
    %c0_9 = arith.constant 0 : index
    %14 = vector.load %arg8[%c0_8, %c0_9] : memref<1x512xf32, #tpu.memory_space<vmem>>, vector<1x512xf32>
    %cst_10 = arith.constant dense<0.000000e+00> : vector<1x512xf32>
    %15 = vector.multi_reduction <add>, %13, %cst_10 [1] : vector<1x8x512xf32> to vector<1x512xf32>
    %16 = arith.addf %14, %15 : vector<1x512xf32>
    %c0_11 = arith.constant 0 : index
    %c0_12 = arith.constant 0 : index
    %17 = vector.load %arg8[%c0_11, %c0_12] : memref<1x512xf32, #tpu.memory_space<vmem>>, vector<1x512xf32>
    tpu.vector_store %arg8[%c0_11, %c0_12], %16 {strides = array<i32>} : memref<1x512xf32, #tpu.memory_space<vmem>>, vector<1x512xf32>,
    %c0_i32_13 = arith.constant 0 : i32
    %18 = arith.cmpi eq, %arg1, %c0_i32_13 : i32
    %19 = arith.extui %18 : i1 to i32
    %c0_i32_14 = arith.constant 0 : i32
    %20 = arith.cmpi ne, %19, %c0_i32_14 : i32
    scf.if %20 {
      %c0_15 = arith.constant 0 : index
      %c0_16 = arith.constant 0 : index
      %21 = vector.load %arg8[%c0_15, %c0_16] : memref<1x512xf32, #tpu.memory_space<vmem>>, vector<1x512xf32>
      %c0_17 = arith.constant 0 : index
      %c0_18 = arith.constant 0 : index
      %22 = vector.load %arg5[%c0_17, %c0_18] : memref<512x128xf32, #tpu.memory_space<vmem>>, vector<512x128xf32>
      %cst_19 = arith.constant dense<0.000000e+00> : vector<1x128xf32>
      %23 = tpu.matmul %21, %22, %cst_19 {dimension_numbers = #tpu.dot_dimension_numbers<[1], [0], [0], [1], [0, 0, 1, 1], [], []>} : vector<1x512xf32>, vector<512x128xf32>, vector<1x128xf32> -> vector<1x128xf32>
      %c0_20 = arith.constant 0 : index
      %c0_21 = arith.constant 0 : index
      %24 = vector.load %arg6[%c0_20, %c0_21] : memref<1x128xf32, #tpu.memory_space<vmem>>, vector<1x128xf32>
      %25 = arith.addf %23, %24 : vector<1x128xf32>
      %c0_22 = arith.constant 0 : index
      %c0_23 = arith.constant 0 : index
      %c0_24 = arith.constant 0 : index
      %26 = vector.load %arg7[%c0_22, %c0_23, %c0_24] : memref<1x1x128xf32, #tpu.memory_space<vmem>>, vector<1x1x128xf32>
      %27 = vector.shape_cast %26 : vector<1x1x128xf32> to vector<1x128xf32>
      %28 = vector.shape_cast %25 : vector<1x128xf32> to vector<1x1x128xf32>
      tpu.vector_store %arg7[%c0_22, %c0_23, %c0_24], %28 {strides = array<i32>} : memref<1x1x128xf32, #tpu.memory_space<vmem>>, vector<1x1x128xf32>,
    } else {
    }
    return
  }
  func.func @transform_0(%arg0: i32, %arg1: i32) -> (i32, i32, i32) {
    %c0_i32 = arith.constant 0 : i32
    %c0_i32_0 = arith.constant 0 : i32
    return %arg0, %arg1, %c0_i32 : i32, i32, i32
  }
  func.func @transform_1(%arg0: i32, %arg1: i32) -> (i32, i32) {
    %c0_i32 = arith.constant 0 : i32
    %c0_i32_0 = arith.constant 0 : i32
    %c0_i32_1 = arith.constant 0 : i32
    return %c0_i32, %c0_i32_0 : i32, i32
  }
  func.func @transform_2(%arg0: i32, %arg1: i32) -> (i32, i32) {
    %c0_i32 = arith.constant 0 : i32
    %c0_i32_0 = arith.constant 0 : i32
    %c0_i32_1 = arith.constant 0 : i32
    return %c0_i32, %c0_i32_0 : i32, i32
  }
  func.func @transform_3(%arg0: i32, %arg1: i32) -> (i32, i32) {
    %c0_i32 = arith.constant 0 : i32
    %c0_i32_0 = arith.constant 0 : i32
    %c0_i32_1 = arith.constant 0 : i32
    return %c0_i32, %c0_i32_0 : i32, i32
  }
  func.func @transform_4(%arg0: i32, %arg1: i32) -> (i32, i32) {
    %c0_i32 = arith.constant 0 : i32
    %c0_i32_0 = arith.constant 0 : i32
    %c0_i32_1 = arith.constant 0 : i32
    return %c0_i32, %c0_i32_0 : i32, i32
  }
  func.func @transform_5(%arg0: i32, %arg1: i32) -> (i32, i32, i32) {
    %c0_i32 = arith.constant 0 : i32
    %c0_i32_0 = arith.constant 0 : i32
    %c0_i32_1 = arith.constant 0 : i32
    return %arg0, %c0_i32, %c0_i32_0 : i32, i32, i32
  }
}

module attributes {stable_mosaic.version = 11 : i64} {
  func.func @mean_mil_kernel(%arg0: i32, %arg1: i32, %arg2: memref<1x8x512xf32, #tpu.memory_space<vmem>>, %arg3: memref<512x512xbf16, #tpu.memory_space<vmem>>, %arg4: memref<1x512xf32, #tpu.memory_space<vmem>>, %arg5: memref<512x128xf32, #tpu.memory_space<vmem>>, %arg6: memref<1x128xf32, #tpu.memory_space<vmem>>, %arg7: memref<1x1x128xf32, #tpu.memory_space<vmem>>, %arg8: memref<1x512xf32, #tpu.memory_space<vmem>>) attributes {dimension_semantics = [#tpu.dimension_semantics<parallel>, #tpu.dimension_semantics<arbitrary>], iteration_bounds = array<i64: 2, 1>, scalar_prefetch = 0 : i64, scratch_operands = 1 : i64, tpu.core_type = #tpu.core_type<tc>, window_params = [{transform_indices = @transform_0, window_bounds = array<i64: 1, 8, 512>}, {pipeline_mode = #tpu.pipeline_mode<synchronous>, transform_indices = @transform_1, window_bounds = array<i64: 512, 512>}, {pipeline_mode = #tpu.pipeline_mode<synchronous>, transform_indices = @transform_2, window_bounds = array<i64: 1, 512>}, {pipeline_mode = #tpu.pipeline_mode<synchronous>, transform_indices = @transform_3, window_bounds = array<i64: 512, 128>}, {pipeline_mode = #tpu.pipeline_mode<synchronous>, transform_indices = @transform_4, window_bounds = array<i64: 1, 128>}, {transform_indices = @transform_5, window_bounds = array<i64: 1, 1, 128>}]} {
    %c0_i32 = arith.constant 0 : i32
    %0 = arith.cmpi eq, %arg1, %c0_i32 : i32
    %1 = arith.extui %0 : i1 to i32
    %c0_i32_0 = arith.constant 0 : i32
    %2 = arith.cmpi ne, %1, %c0_i32_0 : i32
    scf.if %2 {
      %cst_15 = arith.constant 0.000000e+00 : f32
      %21 = vector.broadcast %cst_15 : f32 to vector<1x512xf32>
      %c0_16 = arith.constant 0 : index
      %c0_17 = arith.constant 0 : index
      %22 = vector.load %arg8[%c0_16, %c0_17] : memref<1x512xf32, #tpu.memory_space<vmem>>, vector<1x512xf32>
      tpu.vector_store %arg8[%c0_16, %c0_17], %21 {strides = array<i32>} : memref<1x512xf32, #tpu.memory_space<vmem>>, vector<1x512xf32>,
    } else {
    }
    %c0 = arith.constant 0 : index
    %c0_1 = arith.constant 0 : index
    %c0_2 = arith.constant 0 : index
    %3 = vector.load %arg2[%c0, %c0_1, %c0_2] : memref<1x8x512xf32, #tpu.memory_space<vmem>>, vector<1x8x512xf32>
    %4 = vector.shape_cast %3 : vector<1x8x512xf32> to vector<8x512xf32>
    %5 = arith.truncf %4 : vector<8x512xf32> to vector<8x512xbf16>
    %c0_3 = arith.constant 0 : index
    %c0_4 = arith.constant 0 : index
    %6 = vector.load %arg3[%c0_3, %c0_4] : memref<512x512xbf16, #tpu.memory_space<vmem>>, vector<512x512xbf16>
    %cst = arith.constant dense<0.000000e+00> : vector<8x512xf32>
    %7 = tpu.matmul %5, %6, %cst {dimension_numbers = #tpu.dot_dimension_numbers<[1], [0], [0], [1], [0, 0, 1, 1], [], []>} : vector<8x512xbf16>, vector<512x512xbf16>, vector<8x512xf32> -> vector<8x512xf32>
    %c0_5 = arith.constant 0 : index
    %c0_6 = arith.constant 0 : index
    %8 = vector.load %arg4[%c0_5, %c0_6] : memref<1x512xf32, #tpu.memory_space<vmem>>, vector<1x512xf32>
    %9 = vector.broadcast %8 : vector<1x512xf32> to vector<8x512xf32>
    %10 = arith.addf %7, %9 : vector<8x512xf32>
    %cst_7 = arith.constant 0.000000e+00 : f32
    %11 = vector.broadcast %cst_7 : f32 to vector<8x512xf32>
    %12 = arith.maximumf %10, %11 : vector<8x512xf32>
    %13 = vector.shape_cast %12 : vector<8x512xf32> to vector<1x8x512xf32>
    %c0_8 = arith.constant 0 : index
    %c0_9 = arith.constant 0 : index
    %14 = vector.load %arg8[%c0_8, %c0_9] : memref<1x512xf32, #tpu.memory_space<vmem>>, vector<1x512xf32>
    %cst_10 = arith.constant dense<0.000000e+00> : vector<1x512xf32>
    %15 = vector.multi_reduction <add>, %13, %cst_10 [1] : vector<1x8x512xf32> to vector<1x512xf32>
    %16 = arith.addf %14, %15 : vector<1x512xf32>
    %c0_11 = arith.constant 0 : index
    %c0_12 = arith.constant 0 : index
    %17 = vector.load %arg8[%c0_11, %c0_12] : memref<1x512xf32, #tpu.memory_space<vmem>>, vector<1x512xf32>
    tpu.vector_store %arg8[%c0_11, %c0_12], %16 {strides = array<i32>} : memref<1x512xf32, #tpu.memory_space<vmem>>, vector<1x512xf32>,
    %c0_i32_13 = arith.constant 0 : i32
    %18 = arith.cmpi eq, %arg1, %c0_i32_13 : i32
    %19 = arith.extui %18 : i1 to i32
    %c0_i32_14 = arith.constant 0 : i32
    %20 = arith.cmpi ne, %19, %c0_i32_14 : i32
    scf.if %20 {
      %c0_15 = arith.constant 0 : index
      %c0_16 = arith.constant 0 : index
      %21 = vector.load %arg8[%c0_15, %c0_16] : memref<1x512xf32, #tpu.memory_space<vmem>>, vector<1x512xf32>
      %c0_17 = arith.constant 0 : index
      %c0_18 = arith.constant 0 : index
      %22 = vector.load %arg5[%c0_17, %c0_18] : memref<512x128xf32, #tpu.memory_space<vmem>>, vector<512x128xf32>
      %cst_19 = arith.constant dense<0.000000e+00> : vector<1x128xf32>
      %23 = tpu.matmul %21, %22, %cst_19 {dimension_numbers = #tpu.dot_dimension_numbers<[1], [0], [0], [1], [0, 0, 1, 1], [], []>} : vector<1x512xf32>, vector<512x128xf32>, vector<1x128xf32> -> vector<1x128xf32>
      %c0_20 = arith.constant 0 : index
      %c0_21 = arith.constant 0 : index
      %24 = vector.load %arg6[%c0_20, %c0_21] : memref<1x128xf32, #tpu.memory_space<vmem>>, vector<1x128xf32>
      %25 = arith.addf %23, %24 : vector<1x128xf32>
      %c0_22 = arith.constant 0 : index
      %c0_23 = arith.constant 0 : index
      %c0_24 = arith.constant 0 : index
      %26 = vector.load %arg7[%c0_22, %c0_23, %c0_24] : memref<1x1x128xf32, #tpu.memory_space<vmem>>, vector<1x1x128xf32>
      %27 = vector.shape_cast %26 : vector<1x1x128xf32> to vector<1x128xf32>
      %28 = vector.shape_cast %25 : vector<1x128xf32> to vector<1x1x128xf32>
      tpu.vector_store %arg7[%c0_22, %c0_23, %c0_24], %28 {strides = array<i32>} : memref<1x1x128xf32, #tpu.memory_space<vmem>>, vector<1x1x128xf32>,
    } else {
    }
    return
  }
  func.func @transform_0(%arg0: i32, %arg1: i32) -> (i32, i32, i32) {
    %c0_i32 = arith.constant 0 : i32
    %c0_i32_0 = arith.constant 0 : i32
    return %arg0, %arg1, %c0_i32 : i32, i32, i32
  }
  func.func @transform_1(%arg0: i32, %arg1: i32) -> (i32, i32) {
    %c0_i32 = arith.constant 0 : i32
    %c0_i32_0 = arith.constant 0 : i32
    %c0_i32_1 = arith.constant 0 : i32
    return %c0_i32, %c0_i32_0 : i32, i32
  }
  func.func @transform_2(%arg0: i32, %arg1: i32) -> (i32, i32) {
    %c0_i32 = arith.constant 0 : i32
    %c0_i32_0 = arith.constant 0 : i32
    %c0_i32_1 = arith.constant 0 : i32
    return %c0_i32, %c0_i32_0 : i32, i32
  }
  func.func @transform_3(%arg0: i32, %arg1: i32) -> (i32, i32) {
    %c0_i32 = arith.constant 0 : i32
    %c0_i32_0 = arith.constant 0 : i32
    %c0_i32_1 = arith.constant 0 : i32
    return %c0_i32, %c0_i32_0 : i32, i32
  }
  func.func @transform_4(%arg0: i32, %arg1: i32) -> (i32, i32) {
    %c0_i32 = arith.constant 0 : i32
    %c0_i32_0 = arith.constant 0 : i32
    %c0_i32_1 = arith.constant 0 : i32
    return %c0_i32, %c0_i32_0 : i32, i32
  }
  func.func @transform_5(%arg0: i32, %arg1: i32) -> (i32, i32, i32) {
    %c0_i32 = arith.constant 0 : i32
    %c0_i32_0 = arith.constant 0 : i32
    %c0_i32_1 = arith.constant 0 : i32
    return %arg0, %c0_i32, %c0_i32_0 : i32, i32, i32
  }
}

</mosaic_0001>

<llo_original>
// kernel: tpu_custom_call.1
$region0: #{tpu_custom_call.1}
  #allocation0 [shape = 'u32[]', space=smem, size = 0x4, offset = 0x4, fixed_abs, tag = 'smem constant byte address 0x4 - core index']
  #allocation1 [shape = 'u32[72,128]{1,0:T(1,128)}', space=vmem, size = 0x9000, scoped, tag = 'internal scratch']
  #allocation2 [shape = 'f32[1,512]{1,0:T(1,128)}', space=vmem, size = 0x800, scoped, tag = 'scratch operand']
  %s0 = inlined_call_operand.hbm [shape: f32[2,8,512], index: 0, kind: input, shape index: {}]
  %s1 = inlined_call_operand.hbm [shape: bf16[512,512], index: 1, kind: input, shape index: {}]
  %s2 = inlined_call_operand.hbm [shape: f32[1,512], index: 2, kind: input, shape index: {}]
  %s3 = inlined_call_operand.hbm [shape: f32[512,128], index: 3, kind: input, shape index: {}]
  %s4 = inlined_call_operand.vmem [shape: f32[1,128], index: 4, kind: input, shape index: {}]
  %s5 = inlined_call_operand.hbm [shape: f32[2,1,128], index: 5, kind: output, shape index: {}]
  %s6 = sld [smem:[#allocation0]]
  $region77: #{tpu_custom_call.1} parent=0
    _
  %s8 = ssub.s32 1, %s6
  %s9 = scalar_select 0, %s8, %s6
  $region1: #{tpu_custom_call.1} parent=0
    #allocation3 [shape = 'u8[32768]{0}', space=vmem, size = 0x8000, scoped, tag = 'input window, operand 0']
    #allocation4 [shape = 's32[2]{0}', space=sflag, size = 0x8, scoped, tag = 'scoped memory for tpu_custom_call.1']
    #allocation5 [shape = 's32[2]{0}', space=sflag, size = 0x8, scoped, tag = 'scoped memory for tpu_custom_call.1']
    #allocation6 [shape = 'u8[524288]{0}', space=vmem, size = 0x80000, scoped, tag = 'input window, operand 1, single buffered']
    #allocation7 [shape = 's32[1]{0}', space=sflag, size = 0x4, scoped, tag = 'scoped memory for tpu_custom_call.1']
    #allocation8 [shape = 'u8[2048]{0}', space=vmem, size = 0x800, scoped, tag = 'input window, operand 2, single buffered']
    #allocation9 [shape = 'u8[262144]{0}', space=vmem, size = 0x40000, scoped, tag = 'input window, operand 3, single buffered']
    #allocation10 [shape = 's32[1]{0}', space=sflag, size = 0x4, scoped, tag = 'scoped memory for tpu_custom_call.1']
    #allocation11 [shape = 'u8[1024]{0}', space=vmem, size = 0x400, scoped, tag = 'output window, operand 0']
    %10 = vsyncpa [#allocation4], 0
    %s11 = scalar_lea.sflag [#allocation4], 1
    %12 = vsyncpa %s11, 0
    %13 = vsyncpa [#allocation7], 0
    %14 = vsyncpa [#allocation10], 0
    %15 = vsyncpa [#allocation5], 0
    %s16 = scalar_lea.sflag [#allocation5], 1
    %17 = vsyncpa %s16, 0
    loop: start=0, step=1, limit=4
    $region2: #{tpu_custom_call.1} parent=1 // loop_pre_header
      _
    $region3: #{tpu_custom_call.1} parent=1 // loop_header
      %s19 = sphi 0, %s23
      %p20 = scmp.ge.s32.totalorder %s19, 4
      %s26 = sphi 0, %s38
      %s27 = sphi 0, %s34
      %s28 = sphi 0, %s26
      %s29 = sphi 0, %s27
      %s30 = sphi 0, %s28
      %s31 = sphi 0, %s29
      %s43 = sphi 0, %s45
      %s46 = sphi 0, %s43
      %s47 = sphi 0, %s46
      %s63 = sphi 0, %s47
      %s67 = sphi 0, %s67
      %s69 = sphi 0, %s67
      %s70 = sphi 0, %s69
      %s84 = sphi 0, %s70
      %s88 = sphi 0, %s88
      %s90 = sphi 0, %s88
      %s91 = sphi 0, %s90
      %s105 = sphi 0, %s91
      %s109 = sphi 0, %s109
      %s111 = sphi 0, %s109
      %s112 = sphi 0, %s111
      %s126 = sphi 0, %s112
      %s130 = sphi 0, %s130
      %s132 = sphi 0, %s130
      %s133 = sphi 0, %s132
      %s147 = sphi 0, %s133
      %s153 = sphi 0, %s155
      %s156 = sphi 0, %s153
      %s157 = sphi 0, %s156
      %s173 = sphi 0, %s157
    $region4: #{tpu_custom_call.1} parent=1 // loop_header_branch
      %22 = sbr.rel (%p20) target = $region8
    $region5: #{tpu_custom_call.1} parent=1 // loop_body
      %s24 = ssub.s32 %s19, 1
      %s25 = ssub.s32 %s19, 2
      %s32 = sadd.s32 1, %s27
      %p33 = scmp.ge.s32.totalorder %s32, 1
      %s34 = scalar_select %p33, 0, %s32
      %s35 = sadd.s32 1, %s26
      %s36 = scalar_select %p33, %s35, %s26
      %p37 = scmp.ge.s32.totalorder %s36, 2
      %s38 = scalar_select %p37, 0, %s36
      %s39 = ssub.s32 %s26, %s38
      %s40 = ssub.s32 %s27, %s34
      %s41 = sor.u32 %s39, %s40
      %p42 = scmp.eq.s32.totalorder %s41, 0
      %s44 = sadd.s32 %s43, 1
      %s45 = scalar_select %p42, %s43, %s44
      %p48 = pneg %p42
      %p49 = scmp.eq.s32.totalorder %s19, 1
      %p50 = por %p48, %p49
      %p51 = scmp.ne.s32.totalorder %s43, %s46
      %p52 = scmp.eq.s32.totalorder %s19, 0
      %p53 = por %p51, %p52
      %p54 = scmp.ne.s32.totalorder %s43, %s46
      %p55 = scmp.eq.s32.totalorder %s24, 1
      %p56 = por %p54, %p55
      %p57 = scmp.ne.s32.totalorder %s46, %s47
      %p58 = scmp.eq.s32.totalorder %s24, 0
      %p59 = por %p57, %p58
      %p60 = scmp.ne.s32.totalorder %s46, %s47
      %p61 = scmp.eq.s32.totalorder %s25, 1
      %p62 = por %p60, %p61
      %p64 = scmp.ne.s32.totalorder %s47, %s63
      %p65 = scmp.eq.s32.totalorder %s25, 0
      %p66 = por %p64, %p65
      %s68 = sadd.s32 %s67, 1
      %p71 = scmp.eq.s32.totalorder %s19, 1
      %p72 = scmp.ne.s32.totalorder %s67, %s69
      %p73 = scmp.eq.s32.totalorder %s19, 0
      %p74 = por %p72, %p73
      %p75 = scmp.ne.s32.totalorder %s67, %s69
      %p76 = scmp.eq.s32.totalorder %s24, 1
      %p77 = por %p75, %p76
      %p78 = scmp.ne.s32.totalorder %s69, %s70
      %p79 = scmp.eq.s32.totalorder %s24, 0
      %p80 = por %p78, %p79
      %p81 = scmp.ne.s32.totalorder %s69, %s70
      %p82 = scmp.eq.s32.totalorder %s25, 1
      %p83 = por %p81, %p82
      %p85 = scmp.ne.s32.totalorder %s70, %s84
      %p86 = scmp.eq.s32.totalorder %s25, 0
      %p87 = por %p85, %p86
      %s89 = sadd.s32 %s88, 1
      %p92 = scmp.eq.s32.totalorder %s19, 1
      %p93 = scmp.ne.s32.totalorder %s88, %s90
      %p94 = scmp.eq.s32.totalorder %s19, 0
      %p95 = por %p93, %p94
      %p96 = scmp.ne.s32.totalorder %s88, %s90
      %p97 = scmp.eq.s32.totalorder %s24, 1
      %p98 = por %p96, %p97
      %p99 = scmp.ne.s32.totalorder %s90, %s91
      %p100 = scmp.eq.s32.totalorder %s24, 0
      %p101 = por %p99, %p100
      %p102 = scmp.ne.s32.totalorder %s90, %s91
      %p103 = scmp.eq.s32.totalorder %s25, 1
      %p104 = por %p102, %p103
      %p106 = scmp.ne.s32.totalorder %s91, %s105
      %p107 = scmp.eq.s32.totalorder %s25, 0
      %p108 = por %p106, %p107
      %s110 = sadd.s32 %s109, 1
      %p113 = scmp.eq.s32.totalorder %s19, 1
      %p114 = scmp.ne.s32.totalorder %s109, %s111
      %p115 = scmp.eq.s32.totalorder %s19, 0
      %p116 = por %p114, %p115
      %p117 = scmp.ne.s32.totalorder %s109, %s111
      %p118 = scmp.eq.s32.totalorder %s24, 1
      %p119 = por %p117, %p118
      %p120 = scmp.ne.s32.totalorder %s111, %s112
      %p121 = scmp.eq.s32.totalorder %s24, 0
      %p122 = por %p120, %p121
      %p123 = scmp.ne.s32.totalorder %s111, %s112
      %p124 = scmp.eq.s32.totalorder %s25, 1
      %p125 = por %p123, %p124
      %p127 = scmp.ne.s32.totalorder %s112, %s126
      %p128 = scmp.eq.s32.totalorder %s25, 0
      %p129 = por %p127, %p128
      %s131 = sadd.s32 %s130, 1
      %p134 = scmp.eq.s32.totalorder %s19, 1
      %p135 = scmp.ne.s32.totalorder %s130, %s132
      %p136 = scmp.eq.s32.totalorder %s19, 0
      %p137 = por %p135, %p136
      %p138 = scmp.ne.s32.totalorder %s130, %s132
      %p139 = scmp.eq.s32.totalorder %s24, 1
      %p140 = por %p138, %p139
      %p141 = scmp.ne.s32.totalorder %s132, %s133
      %p142 = scmp.eq.s32.totalorder %s24, 0
      %p143 = por %p141, %p142
      %p144 = scmp.ne.s32.totalorder %s132, %s133
      %p145 = scmp.eq.s32.totalorder %s25, 1
      %p146 = por %p144, %p145
      %p148 = scmp.ne.s32.totalorder %s133, %s147
      %p149 = scmp.eq.s32.totalorder %s25, 0
      %p150 = por %p148, %p149
      %s151 = ssub.s32 %s26, %s38
      %p152 = scmp.eq.s32.totalorder %s151, 0
      %s154 = sadd.s32 %s153, 1
      %s155 = scalar_select %p152, %s153, %s154
      %p158 = pneg %p152
      %p159 = scmp.eq.s32.totalorder %s19, 1
      %p160 = por %p158, %p159
      %p161 = scmp.ne.s32.totalorder %s153, %s156
      %p162 = scmp.eq.s32.totalorder %s19, 0
      %p163 = por %p161, %p162
      %p164 = scmp.ne.s32.totalorder %s153, %s156
      %p165 = scmp.eq.s32.totalorder %s24, 1
      %p166 = por %p164, %p165
      %p167 = scmp.ne.s32.totalorder %s156, %s157
      %p168 = scmp.eq.s32.totalorder %s24, 0
      %p169 = por %p167, %p168
      %p170 = scmp.ne.s32.totalorder %s156, %s157
      %p171 = scmp.eq.s32.totalorder %s25, 1
      %p172 = por %p170, %p171
      %p174 = scmp.ne.s32.totalorder %s157, %s173
      %p175 = scmp.eq.s32.totalorder %s25, 0
      %p176 = por %p174, %p175
      %p177 = scmp.le.s32.totalorder 1, %s19
      %p178 = scmp.lt.s32.totalorder %s19, 3
      %p179 = pnand %p177, %p178
      %p180 = pneg %p179
      // Predicated region
      $region9: #{tpu_custom_call.1} parent=5 // pred_check
        _
      $region10: #{tpu_custom_call.1} parent=5 // pred_check_branch
        %182 = sbr.rel (%p179) target = $region12
      $region11: #{tpu_custom_call.1} parent=5 // pred_region
        %s183 = ssub.s32 %s19, 1
        // Predicated region
        $region13: #{tpu_custom_call.1} parent=11 // pred_check
          %p184 = pneg %p80
        $region14: #{tpu_custom_call.1} parent=11 // pred_check_branch
          %186 = sbr.rel (%p184) target = $region16
        $region15: #{tpu_custom_call.1} parent=11 // pred_region
          %188 = vsyncadd [#allocation7], 0
          %s189 = sshll.u32 %s1, 4
          %s190 = int_to_ptr.hbm [resolvable:$true] %s189
          %s191 = sshll.u32 [#allocation6], 4
          %s192 = int_to_ptr.vmem [resolvable:$true] %s191
          %197 = dma.hbm_to_vmem [thread:$0]  %s190, 16384, %s192, [#allocation7], 256, 256, 16
        $region16: #{tpu_custom_call.1} parent=11 // pred_fallthru
          _
        // Predicated region
        $region17: #{tpu_custom_call.1} parent=11 // pred_check
          %p198 = pneg %p101
        $region18: #{tpu_custom_call.1} parent=11 // pred_check_branch
          %200 = sbr.rel (%p198) target = $region20
        $region19: #{tpu_custom_call.1} parent=11 // pred_region
          %202 = vsyncadd [#allocation7], 0
          %s204 = sshll.u32 %s2, 4
          %s205 = int_to_ptr.hbm [resolvable:$true] %s204
          %s206 = sshll.u32 [#allocation8], 4
          %s207 = int_to_ptr.vmem [resolvable:$true] %s206
          %209 = dma.hbm_to_vmem [thread:$0]  %s205, 64, %s207, [#allocation7]
        $region20: #{tpu_custom_call.1} parent=11 // pred_fallthru
          _
        // Predicated region
        $region21: #{tpu_custom_call.1} parent=11 // pred_check
          %p210 = pneg %p122
        $region22: #{tpu_custom_call.1} parent=11 // pred_check_branch
          %212 = sbr.rel (%p210) target = $region24
        $region23: #{tpu_custom_call.1} parent=11 // pred_region
          %214 = vsyncadd [#allocation10], 0
          %s215 = sshll.u32 %s3, 4
          %s216 = int_to_ptr.hbm [resolvable:$true] %s215
          %s217 = sshll.u32 [#allocation9], 4
          %s218 = int_to_ptr.vmem [resolvable:$true] %s217
          %223 = dma.hbm_to_vmem [thread:$0]  %s216, 8192, %s218, [#allocation10], 128, 128, 8
        $region24: #{tpu_custom_call.1} parent=11 // pred_fallthru
          _
        // Predicated region
        $region25: #{tpu_custom_call.1} parent=11 // pred_check
          %p224 = pneg %p143
        $region26: #{tpu_custom_call.1} parent=11 // pred_check_branch
          %226 = sbr.rel (%p224) target = $region28
        $region27: #{tpu_custom_call.1} parent=11 // pred_region
          _
        $region28: #{tpu_custom_call.1} parent=11 // pred_fallthru
          _
      $region12: #{tpu_custom_call.1} parent=5 // pred_fallthru
        _
      %p227 = scmp.lt.s32.totalorder %s19, 2
      // Predicated region
      $region29: #{tpu_custom_call.1} parent=5 // pred_check
        %p228 = pneg %p227
      $region30: #{tpu_custom_call.1} parent=5 // pred_check_branch
        %230 = sbr.rel (%p228) target = $region32
      $region31: #{tpu_custom_call.1} parent=5 // pred_region
        // Predicated region
        $region33: #{tpu_custom_call.1} parent=31 // pred_check
          %p231 = pneg %p53
        $region34: #{tpu_custom_call.1} parent=31 // pred_check_branch
          %233 = sbr.rel (%p231) target = $region36
        $region35: #{tpu_custom_call.1} parent=31 // pred_region
          %s234 = sand.u32 %s43, 1
          %s235 = scalar_lea.sflag [#allocation4], %s234
          %s236 = sand.u32 %s43, 1
          %s237 = smul.addr %s236, 32
          %s238 = scalar_lea.vmem [#allocation3], %s237
          %240 = vsyncadd %s235, 0
          %s241 = smul.addr %s27, 4
          %s242 = smul.addr %s26, 4
          %s243 = sadd.s32 %s241, %s242
          %s244 = smul.addr %s243, 8
          %s245 = scalar_lea.hbm %s0, %s244
          %s247 = sshll.u32 %s245, 4
          %s248 = int_to_ptr.hbm [resolvable:$true] %s247
          %s249 = sshll.u32 %s238, 4
          %s250 = int_to_ptr.vmem [resolvable:$true] %s249
          %252 = dma.hbm_to_vmem [thread:$0]  %s248, 512, %s250, %s235
        $region36: #{tpu_custom_call.1} parent=31 // pred_fallthru
          _
      $region32: #{tpu_custom_call.1} parent=5 // pred_fallthru
        _
      %p253 = scmp.le.s32.totalorder 1, %s19
      %p254 = scmp.lt.s32.totalorder %s19, 3
      %p255 = pnand %p253, %p254
      %p256 = pneg %p255
      // Predicated region
      $region37: #{tpu_custom_call.1} parent=5 // pred_check
        _
      $region38: #{tpu_custom_call.1} parent=5 // pred_check_branch
        %258 = sbr.rel (%p255) target = $region40
      $region39: #{tpu_custom_call.1} parent=5 // pred_region
        %s259 = ssub.s32 %s19, 1
        %s260 = sand.u32 %s46, 1
        %s261 = scalar_lea.sflag [#allocation4], %s260
        %s262 = sand.u32 %s46, 1
        %s263 = smul.addr %s262, 32
        %s264 = scalar_lea.vmem [#allocation3], %s263
        // Predicated region
        $region41: #{tpu_custom_call.1} parent=39 // pred_check
          %p265 = pneg %p59
        $region42: #{tpu_custom_call.1} parent=39 // pred_check_branch
          %267 = sbr.rel (%p265) target = $region44
        $region43: #{tpu_custom_call.1} parent=39 // pred_region
          %269 = dma.done %s261, 512
        $region44: #{tpu_custom_call.1} parent=39 // pred_fallthru
          _
        // Predicated region
        $region45: #{tpu_custom_call.1} parent=39 // pred_check
          %p270 = pneg %p80
        $region46: #{tpu_custom_call.1} parent=39 // pred_check_branch
          %272 = sbr.rel (%p270) target = $region48
        $region47: #{tpu_custom_call.1} parent=39 // pred_region
          %274 = dma.done [#allocation7], 16384
        $region48: #{tpu_custom_call.1} parent=39 // pred_fallthru
          _
        // Predicated region
        $region49: #{tpu_custom_call.1} parent=39 // pred_check
          %p275 = pneg %p101
        $region50: #{tpu_custom_call.1} parent=39 // pred_check_branch
          %277 = sbr.rel (%p275) target = $region52
        $region51: #{tpu_custom_call.1} parent=39 // pred_region
          %279 = dma.done [#allocation7], 64
        $region52: #{tpu_custom_call.1} parent=39 // pred_fallthru
          _
        // Predicated region
        $region53: #{tpu_custom_call.1} parent=39 // pred_check
          %p280 = pneg %p122
        $region54: #{tpu_custom_call.1} parent=39 // pred_check_branch
          %282 = sbr.rel (%p280) target = $region56
        $region55: #{tpu_custom_call.1} parent=39 // pred_region
          %284 = dma.done [#allocation10], 8192
        $region56: #{tpu_custom_call.1} parent=39 // pred_fallthru
          _
        %s285 = sand.u32 %s46, 1
        %s286 = scalar_lea.sflag [#allocation4], %s285
        %s287 = sand.u32 %s46, 1
        %s288 = smul.addr %s287, 32
        %s289 = scalar_lea.vmem [#allocation3], %s288
        %p290 = pneg %p59
        %p291 = pneg %p56
        %p292 = pneg %p80
        %p293 = pneg %p77
        %p294 = pneg %p101
        %p295 = pneg %p98
        %p296 = pneg %p122
        %p297 = pneg %p119
        %p298 = pneg %p143
        %p299 = pneg %p140
        %p300 = pneg %p169
        %p301 = pneg %p166
        %s302 = sand.u32 %s156, 1
        %s303 = scalar_lea.sflag [#allocation5], %s302
        %s304 = sand.u32 %s156, 1
        %s305 = scalar_lea.vmem [#allocation11], %s304
        %p306 = scmp.eq.s32.totalorder %s29, 0
        // Predicated region
        $region57: #{tpu_custom_call.1} parent=39 // pred_check
          %p307 = pneg %p306
        $region58: #{tpu_custom_call.1} parent=39 // pred_check_branch
          %309 = sbr.rel (%p307) target = $region60
        $region59: #{tpu_custom_call.1} parent=39 // pred_region
          %v310 = vlaneseq
          %vm311 = vcmp.ge.s32.totalorder %v310, 0
          %vm312 = vcmp.lt.s32.totalorder %v310, 512
          %vm313 = vmand %vm311, %vm312
          %314 = vst.msk [vmem:[#allocation2] sm:$0xf] %vm313, 0.0
        $region60: #{tpu_custom_call.1} parent=39 // pred_fallthru
          _
        %v315 = vld [vmem:[%s264] sm:$0xff]
        %v316 = vld [vmem:[%s264 + $0x8] sm:$0xff]
        %v317 = vld [vmem:[%s264 + $0x10] sm:$0xff]
        %v318 = vld [vmem:[%s264 + $0x18] sm:$0xff]
        %v319 = vpack.c.bf16 %v315, %v315
        %v320 = vpack.c.bf16 %v316, %v316
        %v321 = vpack.c.bf16 %v317, %v317
        %v322 = vpack.c.bf16 %v318, %v318
        %v323 = vld [vmem:[#allocation6] sm:$0xff]
        %v324 = vld [vmem:[#allocation6 + $0x8] sm:$0xff]
        %v325 = vld [vmem:[#allocation6 + $0x10] sm:$0xff]
        %v326 = vld [vmem:[#allocation6 + $0x18] sm:$0xff]
        %v327 = vld [vmem:[#allocation6 + $0x20] sm:$0xff]
        %v328 = vld [vmem:[#allocation6 + $0x28] sm:$0xff]
        %v329 = vld [vmem:[#allocation6 + $0x30] sm:$0xff]
        %v330 = vld [vmem:[#allocation6 + $0x38] sm:$0xff]
        %v331 = vld [vmem:[#allocation6 + $0x40] sm:$0xff]
        %v332 = vld [vmem:[#allocation6 + $0x48] sm:$0xff]
        %v333 = vld [vmem:[#allocation6 + $0x50] sm:$0xff]
        %v334 = vld [vmem:[#allocation6 + $0x58] sm:$0xff]
        %v335 = vld [vmem:[#allocation6 + $0x60] sm:$0xff]
        %v336 = vld [vmem:[#allocation6 + $0x68] sm:$0xff]
        %v337 = vld [vmem:[#allocation6 + $0x70] sm:$0xff]
        %v338 = vld [vmem:[#allocation6 + $0x78] sm:$0xff]
        %v339 = vld [vmem:[#allocation6 + $0x80] sm:$0xff]
        %v340 = vld [vmem:[#allocation6 + $0x88] sm:$0xff]
        %v341 = vld [vmem:[#allocation6 + $0x90] sm:$0xff]
        %v342 = vld [vmem:[#allocation6 + $0x98] sm:$0xff]
        %v343 = vld [vmem:[#allocation6 + $0xa0] sm:$0xff]
        %v344 = vld [vmem:[#allocation6 + $0xa8] sm:$0xff]
        %v345 = vld [vmem:[#allocation6 + $0xb0] sm:$0xff]
        %v346 = vld [vmem:[#allocation6 + $0xb8] sm:$0xff]
        %v347 = vld [vmem:[#allocation6 + $0xc0] sm:$0xff]
        %v348 = vld [vmem:[#allocation6 + $0xc8] sm:$0xff]
        %v349 = vld [vmem:[#allocation6 + $0xd0] sm:$0xff]
        %v350 = vld [vmem:[#allocation6 + $0xd8] sm:$0xff]
        %v351 = vld [vmem:[#allocation6 + $0xe0] sm:$0xff]
        %v352 = vld [vmem:[#allocation6 + $0xe8] sm:$0xff]
        %v353 = vld [vmem:[#allocation6 + $0xf0] sm:$0xff]
        %v354 = vld [vmem:[#allocation6 + $0xf8] sm:$0xff]
        %v355 = vld [vmem:[#allocation6 + $0x100] sm:$0xff]
        %v356 = vld [vmem:[#allocation6 + $0x108] sm:$0xff]
        %v357 = vld [vmem:[#allocation6 + $0x110] sm:$0xff]
        %v358 = vld [vmem:[#allocation6 + $0x118] sm:$0xff]
        %v359 = vld [vmem:[#allocation6 + $0x120] sm:$0xff]
        %v360 = vld [vmem:[#allocation6 + $0x128] sm:$0xff]
        %v361 = vld [vmem:[#allocation6 + $0x130] sm:$0xff]
        %v362 = vld [vmem:[#allocation6 + $0x138] sm:$0xff]
        %v363 = vld [vmem:[#allocation6 + $0x140] sm:$0xff]
        %v364 = vld [vmem:[#allocation6 + $0x148] sm:$0xff]
        %v365 = vld [vmem:[#allocation6 + $0x150] sm:$0xff]
        %v366 = vld [vmem:[#allocation6 + $0x158] sm:$0xff]
        %v367 = vld [vmem:[#allocation6 + $0x160] sm:$0xff]
        %v368 = vld [vmem:[#allocation6 + $0x168] sm:$0xff]
        %v369 = vld [vmem:[#allocation6 + $0x170] sm:$0xff]
        %v370 = vld [vmem:[#allocation6 + $0x178] sm:$0xff]
        %v371 = vld [vmem:[#allocation6 + $0x180] sm:$0xff]
        %v372 = vld [vmem:[#allocation6 + $0x188] sm:$0xff]
        %v373 = vld [vmem:[#allocation6 + $0x190] sm:$0xff]
        %v374 = vld [vmem:[#allocation6 + $0x198] sm:$0xff]
        %v375 = vld [vmem:[#allocation6 + $0x1a0] sm:$0xff]
        %v376 = vld [vmem:[#allocation6 + $0x1a8] sm:$0xff]
        %v377 = vld [vmem:[#allocation6 + $0x1b0] sm:$0xff]
        %v378 = vld [vmem:[#allocation6 + $0x1b8] sm:$0xff]
        %v379 = vld [vmem:[#allocation6 + $0x1c0] sm:$0xff]
        %v380 = vld [vmem:[#allocation6 + $0x1c8] sm:$0xff]
        %v381 = vld [vmem:[#allocation6 + $0x1d0] sm:$0xff]
        %v382 = vld [vmem:[#allocation6 + $0x1d8] sm:$0xff]
        %v383 = vld [vmem:[#allocation6 + $0x1e0] sm:$0xff]
        %v384 = vld [vmem:[#allocation6 + $0x1e8] sm:$0xff]
        %v385 = vld [vmem:[#allocation6 + $0x1f0] sm:$0xff]
        %v386 = vld [vmem:[#allocation6 + $0x1f8] sm:$0xff]
        %v387 = vld [vmem:[#allocation6 + $0x200] sm:$0xff]
        %v388 = vld [vmem:[#allocation6 + $0x208] sm:$0xff]
        %v389 = vld [vmem:[#allocation6 + $0x210] sm:$0xff]
        %v390 = vld [vmem:[#allocation6 + $0x218] sm:$0xff]
        %v391 = vld [vmem:[#allocation6 + $0x220] sm:$0xff]
        %v392 = vld [vmem:[#allocation6 + $0x228] sm:$0xff]
        %v393 = vld [vmem:[#allocation6 + $0x230] sm:$0xff]
        %v394 = vld [vmem:[#allocation6 + $0x238] sm:$0xff]
        %v395 = vld [vmem:[#allocation6 + $0x240] sm:$0xff]
        %v396 = vld [vmem:[#allocation6 + $0x248] sm:$0xff]
        %v397 = vld [vmem:[#allocation6 + $0x250] sm:$0xff]
        %v398 = vld [vmem:[#allocation6 + $0x258] sm:$0xff]
        %v399 = vld [vmem:[#allocation6 + $0x260] sm:$0xff]
        %v400 = vld [vmem:[#allocation6 + $0x268] sm:$0xff]
        %v401 = vld [vmem:[#allocation6 + $0x270] sm:$0xff]
        %v402 = vld [vmem:[#allocation6 + $0x278] sm:$0xff]
        %v403 = vld [vmem:[#allocation6 + $0x280] sm:$0xff]
        %v404 = vld [vmem:[#allocation6 + $0x288] sm:$0xff]
        %v405 = vld [vmem:[#allocation6 + $0x290] sm:$0xff]
        %v406 = vld [vmem:[#allocation6 + $0x298] sm:$0xff]
        %v407 = vld [vmem:[#allocation6 + $0x2a0] sm:$0xff]
        %v408 = vld [vmem:[#allocation6 + $0x2a8] sm:$0xff]
        %v409 = vld [vmem:[#allocation6 + $0x2b0] sm:$0xff]
        %v410 = vld [vmem:[#allocation6 + $0x2b8] sm:$0xff]
        %v411 = vld [vmem:[#allocation6 + $0x2c0] sm:$0xff]
        %v412 = vld [vmem:[#allocation6 + $0x2c8] sm:$0xff]
        %v413 = vld [vmem:[#allocation6 + $0x2d0] sm:$0xff]
        %v414 = vld [vmem:[#allocation6 + $0x2d8] sm:$0xff]
        %v415 = vld [vmem:[#allocation6 + $0x2e0] sm:$0xff]
        %v416 = vld [vmem:[#allocation6 + $0x2e8] sm:$0xff]
        %v417 = vld [vmem:[#allocation6 + $0x2f0] sm:$0xff]
        %v418 = vld [vmem:[#allocation6 + $0x2f8] sm:$0xff]
        %v419 = vld [vmem:[#allocation6 + $0x300] sm:$0xff]
        %v420 = vld [vmem:[#allocation6 + $0x308] sm:$0xff]
        %v421 = vld [vmem:[#allocation6 + $0x310] sm:$0xff]
        %v422 = vld [vmem:[#allocation6 + $0x318] sm:$0xff]
        %v423 = vld [vmem:[#allocation6 + $0x320] sm:$0xff]
        %v424 = vld [vmem:[#allocation6 + $0x328] sm:$0xff]
        %v425 = vld [vmem:[#allocation6 + $0x330] sm:$0xff]
        %v426 = vld [vmem:[#allocation6 + $0x338] sm:$0xff]
        %v427 = vld [vmem:[#allocation6 + $0x340] sm:$0xff]
        %v428 = vld [vmem:[#allocation6 + $0x348] sm:$0xff]
        %v429 = vld [vmem:[#allocation6 + $0x350] sm:$0xff]
        %v430 = vld [vmem:[#allocation6 + $0x358] sm:$0xff]
        %v431 = vld [vmem:[#allocation6 + $0x360] sm:$0xff]
        %v432 = vld [vmem:[#allocation6 + $0x368] sm:$0xff]
        %v433 = vld [vmem:[#allocation6 + $0x370] sm:$0xff]
        %v434 = vld [vmem:[#allocation6 + $0x378] sm:$0xff]
        %v435 = vld [vmem:[#allocation6 + $0x380] sm:$0xff]
        %v436 = vld [vmem:[#allocation6 + $0x388] sm:$0xff]
        %v437 = vld [vmem:[#allocation6 + $0x390] sm:$0xff]
        %v438 = vld [vmem:[#allocation6 + $0x398] sm:$0xff]
        %v439 = vld [vmem:[#allocation6 + $0x3a0] sm:$0xff]
        %v440 = vld [vmem:[#allocation6 + $0x3a8] sm:$0xff]
        %v441 = vld [vmem:[#allocation6 + $0x3b0] sm:$0xff]
        %v442 = vld [vmem:[#allocation6 + $0x3b8] sm:$0xff]
        %v443 = vld [vmem:[#allocation6 + $0x3c0] sm:$0xff]
        %v444 = vld [vmem:[#allocation6 + $0x3c8] sm:$0xff]
        %v445 = vld [vmem:[#allocation6 + $0x3d0] sm:$0xff]
        %v446 = vld [vmem:[#allocation6 + $0x3d8] sm:$0xff]
        %v447 = vld [vmem:[#allocation6 + $0x3e0] sm:$0xff]
        %v448 = vld [vmem:[#allocation6 + $0x3e8] sm:$0xff]
        %v449 = vld [vmem:[#allocation6 + $0x3f0] sm:$0xff]
        %v450 = vld [vmem:[#allocation6 + $0x3f8] sm:$0xff]
        %v451 = vld [vmem:[#allocation8] sm:$0xf]
        %v453 = vperm.slane %v451, 0
        %v454 = vperm.slane %v451, 1
        %v455 = vperm.slane %v451, 2
        %v456 = vperm.slane %v451, 3
        %v589 = vunpack.c.l.b16 %v323
        %v590 = vunpack.c.h.b16 %v323
        %v591 = vunpack.c.l.b16 %v324
        %v592 = vunpack.c.h.b16 %v324
        %v593 = vunpack.c.l.b16 %v325
        %v594 = vunpack.c.h.b16 %v325
        %v595 = vunpack.c.l.b16 %v326
        %v596 = vunpack.c.h.b16 %v326
        %v597 = vunpack.c.l.b16 %v327
        %v598 = vunpack.c.h.b16 %v327
        %v599 = vunpack.c.l.b16 %v328
        %v600 = vunpack.c.h.b16 %v328
        %v601 = vunpack.c.l.b16 %v329
        %v602 = vunpack.c.h.b16 %v329
        %v603 = vunpack.c.l.b16 %v330
        %v604 = vunpack.c.h.b16 %v330
        %v605 = vunpack.c.l.b16 %v331
        %v606 = vunpack.c.h.b16 %v331
        %v607 = vunpack.c.l.b16 %v332
        %v608 = vunpack.c.h.b16 %v332
        %v609 = vunpack.c.l.b16 %v333
        %v610 = vunpack.c.h.b16 %v333
        %v611 = vunpack.c.l.b16 %v334
        %v612 = vunpack.c.h.b16 %v334
        %v613 = vunpack.c.l.b16 %v335
        %v614 = vunpack.c.h.b16 %v335
        %v615 = vunpack.c.l.b16 %v336
        %v616 = vunpack.c.h.b16 %v336
        %v617 = vunpack.c.l.b16 %v337
        %v618 = vunpack.c.h.b16 %v337
        %v619 = vunpack.c.l.b16 %v338
        %v620 = vunpack.c.h.b16 %v338
        %v621 = vunpack.c.l.b16 %v339
        %v622 = vunpack.c.h.b16 %v339
        %v623 = vunpack.c.l.b16 %v340
        %v624 = vunpack.c.h.b16 %v340
        %v625 = vunpack.c.l.b16 %v341
        %v626 = vunpack.c.h.b16 %v341
        %v627 = vunpack.c.l.b16 %v342
        %v628 = vunpack.c.h.b16 %v342
        %v629 = vunpack.c.l.b16 %v343
        %v630 = vunpack.c.h.b16 %v343
        %v631 = vunpack.c.l.b16 %v344
        %v632 = vunpack.c.h.b16 %v344
        %v633 = vunpack.c.l.b16 %v345
        %v634 = vunpack.c.h.b16 %v345
        %v635 = vunpack.c.l.b16 %v346
        %v636 = vunpack.c.h.b16 %v346
        %v637 = vunpack.c.l.b16 %v347
        %v638 = vunpack.c.h.b16 %v347
        %v639 = vunpack.c.l.b16 %v348
        %v640 = vunpack.c.h.b16 %v348
        %v641 = vunpack.c.l.b16 %v349
        %v642 = vunpack.c.h.b16 %v349
        %v643 = vunpack.c.l.b16 %v350
        %v644 = vunpack.c.h.b16 %v350
        %v645 = vunpack.c.l.b16 %v351
        %v646 = vunpack.c.h.b16 %v351
        %v647 = vunpack.c.l.b16 %v352
        %v648 = vunpack.c.h.b16 %v352
        %v649 = vunpack.c.l.b16 %v353
        %v650 = vunpack.c.h.b16 %v353
        %v651 = vunpack.c.l.b16 %v354
        %v652 = vunpack.c.h.b16 %v354
        %v653 = vunpack.c.l.b16 %v355
        %v654 = vunpack.c.h.b16 %v355
        %v655 = vunpack.c.l.b16 %v356
        %v656 = vunpack.c.h.b16 %v356
        %v657 = vunpack.c.l.b16 %v357
        %v658 = vunpack.c.h.b16 %v357
        %v659 = vunpack.c.l.b16 %v358
        %v660 = vunpack.c.h.b16 %v358
        %v661 = vunpack.c.l.b16 %v359
        %v662 = vunpack.c.h.b16 %v359
        %v663 = vunpack.c.l.b16 %v360
        %v664 = vunpack.c.h.b16 %v360
        %v665 = vunpack.c.l.b16 %v361
        %v666 = vunpack.c.h.b16 %v361
        %v667 = vunpack.c.l.b16 %v362
        %v668 = vunpack.c.h.b16 %v362
        %v669 = vunpack.c.l.b16 %v363
        %v670 = vunpack.c.h.b16 %v363
        %v671 = vunpack.c.l.b16 %v364
        %v672 = vunpack.c.h.b16 %v364
        %v673 = vunpack.c.l.b16 %v365
        %v674 = vunpack.c.h.b16 %v365
        %v675 = vunpack.c.l.b16 %v366
        %v676 = vunpack.c.h.b16 %v366
        %v677 = vunpack.c.l.b16 %v367
        %v678 = vunpack.c.h.b16 %v367
        %v679 = vunpack.c.l.b16 %v368
        %v680 = vunpack.c.h.b16 %v368
        %v681 = vunpack.c.l.b16 %v369
        %v682 = vunpack.c.h.b16 %v369
        %v683 = vunpack.c.l.b16 %v370
        %v684 = vunpack.c.h.b16 %v370
        %v685 = vunpack.c.l.b16 %v371
        %v686 = vunpack.c.h.b16 %v371
        %v687 = vunpack.c.l.b16 %v372
        %v688 = vunpack.c.h.b16 %v372
        %v689 = vunpack.c.l.b16 %v373
        %v690 = vunpack.c.h.b16 %v373
        %v691 = vunpack.c.l.b16 %v374
        %v692 = vunpack.c.h.b16 %v374
        %v693 = vunpack.c.l.b16 %v375
        %v694 = vunpack.c.h.b16 %v375
        %v695 = vunpack.c.l.b16 %v376
        %v696 = vunpack.c.h.b16 %v376
        %v697 = vunpack.c.l.b16 %v377
        %v698 = vunpack.c.h.b16 %v377
        %v699 = vunpack.c.l.b16 %v378
        %v700 = vunpack.c.h.b16 %v378
        %v701 = vunpack.c.l.b16 %v379
        %v702 = vunpack.c.h.b16 %v379
        %v703 = vunpack.c.l.b16 %v380
        %v704 = vunpack.c.h.b16 %v380
        %v705 = vunpack.c.l.b16 %v381
        %v706 = vunpack.c.h.b16 %v381
        %v707 = vunpack.c.l.b16 %v382
        %v708 = vunpack.c.h.b16 %v382
        %v709 = vunpack.c.l.b16 %v383
        %v710 = vunpack.c.h.b16 %v383
        %v711 = vunpack.c.l.b16 %v384
        %v712 = vunpack.c.h.b16 %v384
        %v713 = vunpack.c.l.b16 %v385
        %v714 = vunpack.c.h.b16 %v385
        %v715 = vunpack.c.l.b16 %v386
        %v716 = vunpack.c.h.b16 %v386
        %v717 = vunpack.c.l.b16 %v387
        %v718 = vunpack.c.h.b16 %v387
        %v719 = vunpack.c.l.b16 %v388
        %v720 = vunpack.c.h.b16 %v388
        %v721 = vunpack.c.l.b16 %v389
        %v722 = vunpack.c.h.b16 %v389
        %v723 = vunpack.c.l.b16 %v390
        %v724 = vunpack.c.h.b16 %v390
        %v725 = vunpack.c.l.b16 %v391
        %v726 = vunpack.c.h.b16 %v391
        %v727 = vunpack.c.l.b16 %v392
        %v728 = vunpack.c.h.b16 %v392
        %v729 = vunpack.c.l.b16 %v393
        %v730 = vunpack.c.h.b16 %v393
        %v731 = vunpack.c.l.b16 %v394
        %v732 = vunpack.c.h.b16 %v394
        %v733 = vunpack.c.l.b16 %v395
        %v734 = vunpack.c.h.b16 %v395
        %v735 = vunpack.c.l.b16 %v396
        %v736 = vunpack.c.h.b16 %v396
        %v737 = vunpack.c.l.b16 %v397
        %v738 = vunpack.c.h.b16 %v397
        %v739 = vunpack.c.l.b16 %v398
        %v740 = vunpack.c.h.b16 %v398
        %v741 = vunpack.c.l.b16 %v399
        %v742 = vunpack.c.h.b16 %v399
        %v743 = vunpack.c.l.b16 %v400
        %v744 = vunpack.c.h.b16 %v400
        %v745 = vunpack.c.l.b16 %v401
        %v746 = vunpack.c.h.b16 %v401
        %v747 = vunpack.c.l.b16 %v402
        %v748 = vunpack.c.h.b16 %v402
        %v749 = vunpack.c.l.b16 %v403
        %v750 = vunpack.c.h.b16 %v403
        %v751 = vunpack.c.l.b16 %v404
        %v752 = vunpack.c.h.b16 %v404
        %v753 = vunpack.c.l.b16 %v405
        %v754 = vunpack.c.h.b16 %v405
        %v755 = vunpack.c.l.b16 %v406
        %v756 = vunpack.c.h.b16 %v406
        %v757 = vunpack.c.l.b16 %v407
        %v758 = vunpack.c.h.b16 %v407
        %v759 = vunpack.c.l.b16 %v408
        %v760 = vunpack.c.h.b16 %v408
        %v761 = vunpack.c.l.b16 %v409
        %v762 = vunpack.c.h.b16 %v409
        %v763 = vunpack.c.l.b16 %v410
        %v764 = vunpack.c.h.b16 %v410
        %v765 = vunpack.c.l.b16 %v411
        %v766 = vunpack.c.h.b16 %v411
        %v767 = vunpack.c.l.b16 %v412
        %v768 = vunpack.c.h.b16 %v412
        %v769 = vunpack.c.l.b16 %v413
        %v770 = vunpack.c.h.b16 %v413
        %v771 = vunpack.c.l.b16 %v414
        %v772 = vunpack.c.h.b16 %v414
        %v773 = vunpack.c.l.b16 %v415
        %v774 = vunpack.c.h.b16 %v415
        %v775 = vunpack.c.l.b16 %v416
        %v776 = vunpack.c.h.b16 %v416
        %v777 = vunpack.c.l.b16 %v417
        %v778 = vunpack.c.h.b16 %v417
        %v779 = vunpack.c.l.b16 %v418
        %v780 = vunpack.c.h.b16 %v418
        %v781 = vunpack.c.l.b16 %v419
        %v782 = vunpack.c.h.b16 %v419
        %v783 = vunpack.c.l.b16 %v420
        %v784 = vunpack.c.h.b16 %v420
        %v785 = vunpack.c.l.b16 %v421
        %v786 = vunpack.c.h.b16 %v421
        %v787 = vunpack.c.l.b16 %v422
        %v788 = vunpack.c.h.b16 %v422
        %v789 = vunpack.c.l.b16 %v423
        %v790 = vunpack.c.h.b16 %v423
        %v791 = vunpack.c.l.b16 %v424
        %v792 = vunpack.c.h.b16 %v424
        %v793 = vunpack.c.l.b16 %v425
        %v794 = vunpack.c.h.b16 %v425
        %v795 = vunpack.c.l.b16 %v426
        %v796 = vunpack.c.h.b16 %v426
        %v797 = vunpack.c.l.b16 %v427
        %v798 = vunpack.c.h.b16 %v427
        %v799 = vunpack.c.l.b16 %v428
        %v800 = vunpack.c.h.b16 %v428
        %v801 = vunpack.c.l.b16 %v429
        %v802 = vunpack.c.h.b16 %v429
        %v803 = vunpack.c.l.b16 %v430
        %v804 = vunpack.c.h.b16 %v430
        %v805 = vunpack.c.l.b16 %v431
        %v806 = vunpack.c.h.b16 %v431
        %v807 = vunpack.c.l.b16 %v432
        %v808 = vunpack.c.h.b16 %v432
        %v809 = vunpack.c.l.b16 %v433
        %v810 = vunpack.c.h.b16 %v433
        %v811 = vunpack.c.l.b16 %v434
        %v812 = vunpack.c.h.b16 %v434
        %v813 = vunpack.c.l.b16 %v435
        %v814 = vunpack.c.h.b16 %v435
        %v815 = vunpack.c.l.b16 %v436
        %v816 = vunpack.c.h.b16 %v436
        %v817 = vunpack.c.l.b16 %v437
        %v818 = vunpack.c.h.b16 %v437
        %v819 = vunpack.c.l.b16 %v438
        %v820 = vunpack.c.h.b16 %v438
        %v821 = vunpack.c.l.b16 %v439
        %v822 = vunpack.c.h.b16 %v439
        %v823 = vunpack.c.l.b16 %v440
        %v824 = vunpack.c.h.b16 %v440
        %v825 = vunpack.c.l.b16 %v441
        %v826 = vunpack.c.h.b16 %v441
        %v827 = vunpack.c.l.b16 %v442
        %v828 = vunpack.c.h.b16 %v442
        %v829 = vunpack.c.l.b16 %v443
        %v830 = vunpack.c.h.b16 %v443
        %v831 = vunpack.c.l.b16 %v444
        %v832 = vunpack.c.h.b16 %v444
        %v833 = vunpack.c.l.b16 %v445
        %v834 = vunpack.c.h.b16 %v445
        %v835 = vunpack.c.l.b16 %v446
        %v836 = vunpack.c.h.b16 %v446
        %v837 = vunpack.c.l.b16 %v447
        %v838 = vunpack.c.h.b16 %v447
        %v839 = vunpack.c.l.b16 %v448
        %v840 = vunpack.c.h.b16 %v448
        %v841 = vunpack.c.l.b16 %v449
        %v842 = vunpack.c.h.b16 %v449
        %v843 = vunpack.c.l.b16 %v450
        %v844 = vunpack.c.h.b16 %v450
        %v845 = vpack.c.b16 %v593, %v589
        %v846 = vpack.c.b16 %v594, %v590
        %v847 = vpack.c.b16 %v595, %v591
        %v848 = vpack.c.b16 %v596, %v592
        %v849 = vpack.c.b16 %v601, %v597
        %v850 = vpack.c.b16 %v602, %v598
        %v851 = vpack.c.b16 %v603, %v599
        %v852 = vpack.c.b16 %v604, %v600
        %v853 = vpack.c.b16 %v609, %v605
        %v854 = vpack.c.b16 %v610, %v606
        %v855 = vpack.c.b16 %v611, %v607
        %v856 = vpack.c.b16 %v612, %v608
        %v857 = vpack.c.b16 %v617, %v613
        %v858 = vpack.c.b16 %v618, %v614
        %v859 = vpack.c.b16 %v619, %v615
        %v860 = vpack.c.b16 %v620, %v616
        %v861 = vpack.c.b16 %v625, %v621
        %v862 = vpack.c.b16 %v626, %v622
        %v863 = vpack.c.b16 %v627, %v623
        %v864 = vpack.c.b16 %v628, %v624
        %v865 = vpack.c.b16 %v633, %v629
        %v866 = vpack.c.b16 %v634, %v630
        %v867 = vpack.c.b16 %v635, %v631
        %v868 = vpack.c.b16 %v636, %v632
        %v869 = vpack.c.b16 %v641, %v637
        %v870 = vpack.c.b16 %v642, %v638
        %v871 = vpack.c.b16 %v643, %v639
        %v872 = vpack.c.b16 %v644, %v640
        %v873 = vpack.c.b16 %v649, %v645
        %v874 = vpack.c.b16 %v650, %v646
        %v875 = vpack.c.b16 %v651, %v647
        %v876 = vpack.c.b16 %v652, %v648
        %v877 = vpack.c.b16 %v657, %v653
        %v878 = vpack.c.b16 %v658, %v654
        %v879 = vpack.c.b16 %v659, %v655
        %v880 = vpack.c.b16 %v660, %v656
        %v881 = vpack.c.b16 %v665, %v661
        %v882 = vpack.c.b16 %v666, %v662
        %v883 = vpack.c.b16 %v667, %v663
        %v884 = vpack.c.b16 %v668, %v664
        %v885 = vpack.c.b16 %v673, %v669
        %v886 = vpack.c.b16 %v674, %v670
        %v887 = vpack.c.b16 %v675, %v671
        %v888 = vpack.c.b16 %v676, %v672
        %v889 = vpack.c.b16 %v681, %v677
        %v890 = vpack.c.b16 %v682, %v678
        %v891 = vpack.c.b16 %v683, %v679
        %v892 = vpack.c.b16 %v684, %v680
        %v893 = vpack.c.b16 %v689, %v685
        %v894 = vpack.c.b16 %v690, %v686
        %v895 = vpack.c.b16 %v691, %v687
        %v896 = vpack.c.b16 %v692, %v688
        %v897 = vpack.c.b16 %v697, %v693
        %v898 = vpack.c.b16 %v698, %v694
        %v899 = vpack.c.b16 %v699, %v695
        %v900 = vpack.c.b16 %v700, %v696
        %v901 = vpack.c.b16 %v705, %v701
        %v902 = vpack.c.b16 %v706, %v702
        %v903 = vpack.c.b16 %v707, %v703
        %v904 = vpack.c.b16 %v708, %v704
        %v905 = vpack.c.b16 %v713, %v709
        %v906 = vpack.c.b16 %v714, %v710
        %v907 = vpack.c.b16 %v715, %v711
        %v908 = vpack.c.b16 %v716, %v712
        %v909 = vpack.c.b16 %v721, %v717
        %v910 = vpack.c.b16 %v722, %v718
        %v911 = vpack.c.b16 %v723, %v719
        %v912 = vpack.c.b16 %v724, %v720
        %v913 = vpack.c.b16 %v729, %v725
        %v914 = vpack.c.b16 %v730, %v726
        %v915 = vpack.c.b16 %v731, %v727
        %v916 = vpack.c.b16 %v732, %v728
        %v917 = vpack.c.b16 %v737, %v733
        %v918 = vpack.c.b16 %v738, %v734
        %v919 = vpack.c.b16 %v739, %v735
        %v920 = vpack.c.b16 %v740, %v736
        %v921 = vpack.c.b16 %v745, %v741
        %v922 = vpack.c.b16 %v746, %v742
        %v923 = vpack.c.b16 %v747, %v743
        %v924 = vpack.c.b16 %v748, %v744
        %v925 = vpack.c.b16 %v753, %v749
        %v926 = vpack.c.b16 %v754, %v750
        %v927 = vpack.c.b16 %v755, %v751
        %v928 = vpack.c.b16 %v756, %v752
        %v929 = vpack.c.b16 %v761, %v757
        %v930 = vpack.c.b16 %v762, %v758
        %v931 = vpack.c.b16 %v763, %v759
        %v932 = vpack.c.b16 %v764, %v760
        %v933 = vpack.c.b16 %v769, %v765
        %v934 = vpack.c.b16 %v770, %v766
        %v935 = vpack.c.b16 %v771, %v767
        %v936 = vpack.c.b16 %v772, %v768
        %v937 = vpack.c.b16 %v777, %v773
        %v938 = vpack.c.b16 %v778, %v774
        %v939 = vpack.c.b16 %v779, %v775
        %v940 = vpack.c.b16 %v780, %v776
        %v941 = vpack.c.b16 %v785, %v781
        %v942 = vpack.c.b16 %v786, %v782
        %v943 = vpack.c.b16 %v787, %v783
        %v944 = vpack.c.b16 %v788, %v784
        %v945 = vpack.c.b16 %v793, %v789
        %v946 = vpack.c.b16 %v794, %v790
        %v947 = vpack.c.b16 %v795, %v791
        %v948 = vpack.c.b16 %v796, %v792
        %v949 = vpack.c.b16 %v801, %v797
        %v950 = vpack.c.b16 %v802, %v798
        %v951 = vpack.c.b16 %v803, %v799
        %v952 = vpack.c.b16 %v804, %v800
        %v953 = vpack.c.b16 %v809, %v805
        %v954 = vpack.c.b16 %v810, %v806
        %v955 = vpack.c.b16 %v811, %v807
        %v956 = vpack.c.b16 %v812, %v808
        %v957 = vpack.c.b16 %v817, %v813
        %v958 = vpack.c.b16 %v818, %v814
        %v959 = vpack.c.b16 %v819, %v815
        %v960 = vpack.c.b16 %v820, %v816
        %v961 = vpack.c.b16 %v825, %v821
        %v962 = vpack.c.b16 %v826, %v822
        %v963 = vpack.c.b16 %v827, %v823
        %v964 = vpack.c.b16 %v828, %v824
        %v965 = vpack.c.b16 %v833, %v829
        %v966 = vpack.c.b16 %v834, %v830
        %v967 = vpack.c.b16 %v835, %v831
        %v968 = vpack.c.b16 %v836, %v832
        %v969 = vpack.c.b16 %v841, %v837
        %v970 = vpack.c.b16 %v842, %v838
        %v971 = vpack.c.b16 %v843, %v839
        %v972 = vpack.c.b16 %v844, %v840
        %1101 = vmatpush.bf16.msra.mxu0 %v873
        %1102 = vmatpush.bf16.msra.mxu0 %v869
        %1103 = vmatpush.bf16.msra.mxu0 %v865
        %1104 = vmatpush.bf16.msra.mxu0 %v861
        %1105 = vmatpush.bf16.msra.mxu0 %v857
        %1106 = vmatpush.bf16.msra.mxu0 %v853
        %1107 = vmatpush.bf16.msra.mxu0 %v849
        %1108 = vmatpush.bf16.msra.mxu0 %v845
        %1109 = vmatmul.bf16.gmra.mxu0 %v319
        %v1110 = vpop.f32.mrf.mxu0
        %v1111 = vadd.f32 %v453, %v1110
        %v1112 = vpop.f32.mrf.mxu0
        %1113 = vdwg.mxu0
        %1114 = vmatpush.bf16.msra.mxu0 %v905
        %1115 = vmatpush.bf16.msra.mxu0 %v901
        %1116 = vmatpush.bf16.msra.mxu0 %v897
        %1117 = vmatpush.bf16.msra.mxu0 %v893
        %1118 = vmatpush.bf16.msra.mxu0 %v889
        %1119 = vmatpush.bf16.msra.mxu0 %v885
        %1120 = vmatpush.bf16.msra.mxu0 %v881
        %1121 = vmatpush.bf16.msra.mxu0 %v877
        %1122 = vmatmul.bf16.gmra.mxu0 %v320
        %v1123 = vpop.f32.mrf.mxu0
        %v1124 = vadd.f32 %v1111, %v1123
        %v1125 = vpop.f32.mrf.mxu0
        %1126 = vdwg.mxu0
        %1127 = vmatpush.bf16.msra.mxu0 %v937
        %1128 = vmatpush.bf16.msra.mxu0 %v933
        %1129 = vmatpush.bf16.msra.mxu0 %v929
        %1130 = vmatpush.bf16.msra.mxu0 %v925
        %1131 = vmatpush.bf16.msra.mxu0 %v921
        %1132 = vmatpush.bf16.msra.mxu0 %v917
        %1133 = vmatpush.bf16.msra.mxu0 %v913
        %1134 = vmatpush.bf16.msra.mxu0 %v909
        %1135 = vmatmul.bf16.gmra.mxu0 %v321
        %v1136 = vpop.f32.mrf.mxu0
        %v1137 = vadd.f32 %v1124, %v1136
        %v1138 = vpop.f32.mrf.mxu0
        %1139 = vdwg.mxu0
        %1140 = vmatpush.bf16.msra.mxu0 %v969
        %1141 = vmatpush.bf16.msra.mxu0 %v965
        %1142 = vmatpush.bf16.msra.mxu0 %v961
        %1143 = vmatpush.bf16.msra.mxu0 %v957
        %1144 = vmatpush.bf16.msra.mxu0 %v953
        %1145 = vmatpush.bf16.msra.mxu0 %v949
        %1146 = vmatpush.bf16.msra.mxu0 %v945
        %1147 = vmatpush.bf16.msra.mxu0 %v941
        %1148 = vmatmul.bf16.gmra.mxu0 %v322
        %v1149 = vpop.f32.mrf.mxu0
        %v1150 = vadd.f32 %v1137, %v1149
        %v1151 = vpop.f32.mrf.mxu0
        %1152 = vdwg.mxu0
        %1153 = vmatpush.bf16.msra.mxu0 %v874
        %1154 = vmatpush.bf16.msra.mxu0 %v870
        %1155 = vmatpush.bf16.msra.mxu0 %v866
        %1156 = vmatpush.bf16.msra.mxu0 %v862
        %1157 = vmatpush.bf16.msra.mxu0 %v858
        %1158 = vmatpush.bf16.msra.mxu0 %v854
        %1159 = vmatpush.bf16.msra.mxu0 %v850
        %1160 = vmatpush.bf16.msra.mxu0 %v846
        %1161 = vmatmul.bf16.gmra.mxu0 %v319
        %v1162 = vpop.f32.mrf.mxu0
        %v1163 = vadd.f32 %v454, %v1162
        %v1164 = vpop.f32.mrf.mxu0
        %1165 = vdwg.mxu0
        %1166 = vmatpush.bf16.msra.mxu0 %v906
        %1167 = vmatpush.bf16.msra.mxu0 %v902
        %1168 = vmatpush.bf16.msra.mxu0 %v898
        %1169 = vmatpush.bf16.msra.mxu0 %v894
        %1170 = vmatpush.bf16.msra.mxu0 %v890
        %1171 = vmatpush.bf16.msra.mxu0 %v886
        %1172 = vmatpush.bf16.msra.mxu0 %v882
        %1173 = vmatpush.bf16.msra.mxu0 %v878
        %1174 = vmatmul.bf16.gmra.mxu0 %v320
        %v1175 = vpop.f32.mrf.mxu0
        %v1176 = vadd.f32 %v1163, %v1175
        %v1177 = vpop.f32.mrf.mxu0
        %1178 = vdwg.mxu0
        %1179 = vmatpush.bf16.msra.mxu0 %v938
        %1180 = vmatpush.bf16.msra.mxu0 %v934
        %1181 = vmatpush.bf16.msra.mxu0 %v930
        %1182 = vmatpush.bf16.msra.mxu0 %v926
        %1183 = vmatpush.bf16.msra.mxu0 %v922
        %1184 = vmatpush.bf16.msra.mxu0 %v918
        %1185 = vmatpush.bf16.msra.mxu0 %v914
        %1186 = vmatpush.bf16.msra.mxu0 %v910
        %1187 = vmatmul.bf16.gmra.mxu0 %v321
        %v1188 = vpop.f32.mrf.mxu0
        %v1189 = vadd.f32 %v1176, %v1188
        %v1190 = vpop.f32.mrf.mxu0
        %1191 = vdwg.mxu0
        %1192 = vmatpush.bf16.msra.mxu0 %v970
        %1193 = vmatpush.bf16.msra.mxu0 %v966
        %1194 = vmatpush.bf16.msra.mxu0 %v962
        %1195 = vmatpush.bf16.msra.mxu0 %v958
        %1196 = vmatpush.bf16.msra.mxu0 %v954
        %1197 = vmatpush.bf16.msra.mxu0 %v950
        %1198 = vmatpush.bf16.msra.mxu0 %v946
        %1199 = vmatpush.bf16.msra.mxu0 %v942
        %1200 = vmatmul.bf16.gmra.mxu0 %v322
        %v1201 = vpop.f32.mrf.mxu0
        %v1202 = vadd.f32 %v1189, %v1201
        %v1203 = vpop.f32.mrf.mxu0
        %1204 = vdwg.mxu0
        %1205 = vmatpush.bf16.msra.mxu0 %v875
        %1206 = vmatpush.bf16.msra.mxu0 %v871
        %1207 = vmatpush.bf16.msra.mxu0 %v867
        %1208 = vmatpush.bf16.msra.mxu0 %v863
        %1209 = vmatpush.bf16.msra.mxu0 %v859
        %1210 = vmatpush.bf16.msra.mxu0 %v855
        %1211 = vmatpush.bf16.msra.mxu0 %v851
        %1212 = vmatpush.bf16.msra.mxu0 %v847
        %1213 = vmatmul.bf16.gmra.mxu0 %v319
        %v1214 = vpop.f32.mrf.mxu0
        %v1215 = vadd.f32 %v455, %v1214
        %v1216 = vpop.f32.mrf.mxu0
        %1217 = vdwg.mxu0
        %1218 = vmatpush.bf16.msra.mxu0 %v907
        %1219 = vmatpush.bf16.msra.mxu0 %v903
        %1220 = vmatpush.bf16.msra.mxu0 %v899
        %1221 = vmatpush.bf16.msra.mxu0 %v895
        %1222 = vmatpush.bf16.msra.mxu0 %v891
        %1223 = vmatpush.bf16.msra.mxu0 %v887
        %1224 = vmatpush.bf16.msra.mxu0 %v883
        %1225 = vmatpush.bf16.msra.mxu0 %v879
        %1226 = vmatmul.bf16.gmra.mxu0 %v320
        %v1227 = vpop.f32.mrf.mxu0
        %v1228 = vadd.f32 %v1215, %v1227
        %v1229 = vpop.f32.mrf.mxu0
        %1230 = vdwg.mxu0
        %1231 = vmatpush.bf16.msra.mxu0 %v939
        %1232 = vmatpush.bf16.msra.mxu0 %v935
        %1233 = vmatpush.bf16.msra.mxu0 %v931
        %1234 = vmatpush.bf16.msra.mxu0 %v927
        %1235 = vmatpush.bf16.msra.mxu0 %v923
        %1236 = vmatpush.bf16.msra.mxu0 %v919
        %1237 = vmatpush.bf16.msra.mxu0 %v915
        %1238 = vmatpush.bf16.msra.mxu0 %v911
        %1239 = vmatmul.bf16.gmra.mxu0 %v321
        %v1240 = vpop.f32.mrf.mxu0
        %v1241 = vadd.f32 %v1228, %v1240
        %v1242 = vpop.f32.mrf.mxu0
        %1243 = vdwg.mxu0
        %1244 = vmatpush.bf16.msra.mxu0 %v971
        %1245 = vmatpush.bf16.msra.mxu0 %v967
        %1246 = vmatpush.bf16.msra.mxu0 %v963
        %1247 = vmatpush.bf16.msra.mxu0 %v959
        %1248 = vmatpush.bf16.msra.mxu0 %v955
        %1249 = vmatpush.bf16.msra.mxu0 %v951
        %1250 = vmatpush.bf16.msra.mxu0 %v947
        %1251 = vmatpush.bf16.msra.mxu0 %v943
        %1252 = vmatmul.bf16.gmra.mxu0 %v322
        %v1253 = vpop.f32.mrf.mxu0
        %v1254 = vadd.f32 %v1241, %v1253
        %v1255 = vpop.f32.mrf.mxu0
        %1256 = vdwg.mxu0
        %1257 = vmatpush.bf16.msra.mxu0 %v876
        %1258 = vmatpush.bf16.msra.mxu0 %v872
        %1259 = vmatpush.bf16.msra.mxu0 %v868
        %1260 = vmatpush.bf16.msra.mxu0 %v864
        %1261 = vmatpush.bf16.msra.mxu0 %v860
        %1262 = vmatpush.bf16.msra.mxu0 %v856
        %1263 = vmatpush.bf16.msra.mxu0 %v852
        %1264 = vmatpush.bf16.msra.mxu0 %v848
        %1265 = vmatmul.bf16.gmra.mxu0 %v319
        %v1266 = vpop.f32.mrf.mxu0
        %v1267 = vadd.f32 %v456, %v1266
        %v1268 = vpop.f32.mrf.mxu0
        %1269 = vdwg.mxu0
        %1270 = vmatpush.bf16.msra.mxu0 %v908
        %1271 = vmatpush.bf16.msra.mxu0 %v904
        %1272 = vmatpush.bf16.msra.mxu0 %v900
        %1273 = vmatpush.bf16.msra.mxu0 %v896
        %1274 = vmatpush.bf16.msra.mxu0 %v892
        %1275 = vmatpush.bf16.msra.mxu0 %v888
        %1276 = vmatpush.bf16.msra.mxu0 %v884
        %1277 = vmatpush.bf16.msra.mxu0 %v880
        %1278 = vmatmul.bf16.gmra.mxu0 %v320
        %v1279 = vpop.f32.mrf.mxu0
        %v1280 = vadd.f32 %v1267, %v1279
        %v1281 = vpop.f32.mrf.mxu0
        %1282 = vdwg.mxu0
        %1283 = vmatpush.bf16.msra.mxu0 %v940
        %1284 = vmatpush.bf16.msra.mxu0 %v936
        %1285 = vmatpush.bf16.msra.mxu0 %v932
        %1286 = vmatpush.bf16.msra.mxu0 %v928
        %1287 = vmatpush.bf16.msra.mxu0 %v924
        %1288 = vmatpush.bf16.msra.mxu0 %v920
        %1289 = vmatpush.bf16.msra.mxu0 %v916
        %1290 = vmatpush.bf16.msra.mxu0 %v912
        %1291 = vmatmul.bf16.gmra.mxu0 %v321
        %v1292 = vpop.f32.mrf.mxu0
        %v1293 = vadd.f32 %v1280, %v1292
        %v1294 = vpop.f32.mrf.mxu0
        %1295 = vdwg.mxu0
        %1296 = vmatpush.bf16.msra.mxu0 %v972
        %1297 = vmatpush.bf16.msra.mxu0 %v968
        %1298 = vmatpush.bf16.msra.mxu0 %v964
        %1299 = vmatpush.bf16.msra.mxu0 %v960
        %1300 = vmatpush.bf16.msra.mxu0 %v956
        %1301 = vmatpush.bf16.msra.mxu0 %v952
        %1302 = vmatpush.bf16.msra.mxu0 %v948
        %1303 = vmatpush.bf16.msra.mxu0 %v944
        %1304 = vmatmul.bf16.gmra.mxu0 %v322
        %v1305 = vpop.f32.mrf.mxu0
        %v1306 = vadd.f32 %v1293, %v1305
        %v1307 = vpop.f32.mrf.mxu0
        %1308 = vdwg.mxu0
        %v1309 = vmax.f32 %v1150, 0.0
        %v1310 = vmax.f32 %v1202, 0.0
        %v1311 = vmax.f32 %v1254, 0.0
        %v1312 = vmax.f32 %v1306, 0.0
        %v1313 = vld [vmem:[#allocation2] sm:$0xf]
        %v1314 = vrot.slane %v1309, 4
        %v1315 = vadd.f32 %v1309, %v1314
        %v1316 = vrot.slane %v1315, 2
        %v1317 = vadd.f32 %v1315, %v1316
        %v1318 = vrot.slane %v1317, 1
        %v1319 = vadd.f32 %v1317, %v1318
        %v1320 = vrot.slane %v1310, 4
        %v1321 = vadd.f32 %v1310, %v1320
        %v1322 = vrot.slane %v1321, 2
        %v1323 = vadd.f32 %v1321, %v1322
        %v1324 = vrot.slane %v1323, 1
        %v1325 = vadd.f32 %v1323, %v1324
        %v1326 = vrot.slane %v1311, 4
        %v1327 = vadd.f32 %v1311, %v1326
        %v1328 = vrot.slane %v1327, 2
        %v1329 = vadd.f32 %v1327, %v1328
        %v1330 = vrot.slane %v1329, 1
        %v1331 = vadd.f32 %v1329, %v1330
        %v1332 = vrot.slane %v1312, 4
        %v1333 = vadd.f32 %v1312, %v1332
        %v1334 = vrot.slane %v1333, 2
        %v1335 = vadd.f32 %v1333, %v1334
        %v1336 = vrot.slane %v1335, 1
        %v1337 = vadd.f32 %v1335, %v1336
        %v1342 = vrot.slane %v1325, 7
        %v1343 = vrot.slane %v1331, 6
        %v1344 = vrot.slane %v1337, 5
        %vm1345 = vcmask 1040384
        %v1346 = vsel %vm1345, %v1319, %v1342
        %vm1347 = vcmask 1042434
        %v1348 = vsel %vm1347, %v1343, %v1344
        %vm1349 = vcmask 1041408
        %v1350 = vsel %vm1349, %v1346, %v1348
        %v1352 = vadd.f32 %v1313, %v1350
        %v1353 = vlaneseq
        %vm1354 = vcmp.ge.s32.totalorder %v1353, 0
        %vm1355 = vcmp.lt.s32.totalorder %v1353, 512
        %vm1356 = vmand %vm1354, %vm1355
        %1357 = vst.msk [vmem:[#allocation2] sm:$0xf] %vm1356, %v1352
        // Predicated region
        $region61: #{tpu_custom_call.1} parent=39 // pred_check
          %p1358 = pneg %p306
        $region62: #{tpu_custom_call.1} parent=39 // pred_check_branch
          %1360 = sbr.rel (%p1358) target = $region64
        $region63: #{tpu_custom_call.1} parent=39 // pred_region
          %v1361 = vld [vmem:[#allocation2] sm:$0xf]
          %v1362 = vld [vmem:[#allocation9] sm:$0xff]
          %v1363 = vld [vmem:[#allocation9 + $0x8] sm:$0xff]
          %v1364 = vld [vmem:[#allocation9 + $0x10] sm:$0xff]
          %v1365 = vld [vmem:[#allocation9 + $0x18] sm:$0xff]
          %v1366 = vld [vmem:[#allocation9 + $0x20] sm:$0xff]
          %v1367 = vld [vmem:[#allocation9 + $0x28] sm:$0xff]
          %v1368 = vld [vmem:[#allocation9 + $0x30] sm:$0xff]
          %v1369 = vld [vmem:[#allocation9 + $0x38] sm:$0xff]
          %v1370 = vld [vmem:[#allocation9 + $0x40] sm:$0xff]
          %v1371 = vld [vmem:[#allocation9 + $0x48] sm:$0xff]
          %v1372 = vld [vmem:[#allocation9 + $0x50] sm:$0xff]
          %v1373 = vld [vmem:[#allocation9 + $0x58] sm:$0xff]
          %v1374 = vld [vmem:[#allocation9 + $0x60] sm:$0xff]
          %v1375 = vld [vmem:[#allocation9 + $0x68] sm:$0xff]
          %v1376 = vld [vmem:[#allocation9 + $0x70] sm:$0xff]
          %v1377 = vld [vmem:[#allocation9 + $0x78] sm:$0xff]
          %v1378 = vld [vmem:[#allocation9 + $0x80] sm:$0xff]
          %v1379 = vld [vmem:[#allocation9 + $0x88] sm:$0xff]
          %v1380 = vld [vmem:[#allocation9 + $0x90] sm:$0xff]
          %v1381 = vld [vmem:[#allocation9 + $0x98] sm:$0xff]
          %v1382 = vld [vmem:[#allocation9 + $0xa0] sm:$0xff]
          %v1383 = vld [vmem:[#allocation9 + $0xa8] sm:$0xff]
          %v1384 = vld [vmem:[#allocation9 + $0xb0] sm:$0xff]
          %v1385 = vld [vmem:[#allocation9 + $0xb8] sm:$0xff]
          %v1386 = vld [vmem:[#allocation9 + $0xc0] sm:$0xff]
          %v1387 = vld [vmem:[#allocation9 + $0xc8] sm:$0xff]
          %v1388 = vld [vmem:[#allocation9 + $0xd0] sm:$0xff]
          %v1389 = vld [vmem:[#allocation9 + $0xd8] sm:$0xff]
          %v1390 = vld [vmem:[#allocation9 + $0xe0] sm:$0xff]
          %v1391 = vld [vmem:[#allocation9 + $0xe8] sm:$0xff]
          %v1392 = vld [vmem:[#allocation9 + $0xf0] sm:$0xff]
          %v1393 = vld [vmem:[#allocation9 + $0xf8] sm:$0xff]
          %v1394 = vld [vmem:[#allocation9 + $0x100] sm:$0xff]
          %v1395 = vld [vmem:[#allocation9 + $0x108] sm:$0xff]
          %v1396 = vld [vmem:[#allocation9 + $0x110] sm:$0xff]
          %v1397 = vld [vmem:[#allocation9 + $0x118] sm:$0xff]
          %v1398 = vld [vmem:[#allocation9 + $0x120] sm:$0xff]
          %v1399 = vld [vmem:[#allocation9 + $0x128] sm:$0xff]
          %v1400 = vld [vmem:[#allocation9 + $0x130] sm:$0xff]
          %v1401 = vld [vmem:[#allocation9 + $0x138] sm:$0xff]
          %v1402 = vld [vmem:[#allocation9 + $0x140] sm:$0xff]
          %v1403 = vld [vmem:[#allocation9 + $0x148] sm:$0xff]
          %v1404 = vld [vmem:[#allocation9 + $0x150] sm:$0xff]
          %v1405 = vld [vmem:[#allocation9 + $0x158] sm:$0xff]
          %v1406 = vld [vmem:[#allocation9 + $0x160] sm:$0xff]
          %v1407 = vld [vmem:[#allocation9 + $0x168] sm:$0xff]
          %v1408 = vld [vmem:[#allocation9 + $0x170] sm:$0xff]
          %v1409 = vld [vmem:[#allocation9 + $0x178] sm:$0xff]
          %v1410 = vld [vmem:[#allocation9 + $0x180] sm:$0xff]
          %v1411 = vld [vmem:[#allocation9 + $0x188] sm:$0xff]
          %v1412 = vld [vmem:[#allocation9 + $0x190] sm:$0xff]
          %v1413 = vld [vmem:[#allocation9 + $0x198] sm:$0xff]
          %v1414 = vld [vmem:[#allocation9 + $0x1a0] sm:$0xff]
          %v1415 = vld [vmem:[#allocation9 + $0x1a8] sm:$0xff]
          %v1416 = vld [vmem:[#allocation9 + $0x1b0] sm:$0xff]
          %v1417 = vld [vmem:[#allocation9 + $0x1b8] sm:$0xff]
          %v1418 = vld [vmem:[#allocation9 + $0x1c0] sm:$0xff]
          %v1419 = vld [vmem:[#allocation9 + $0x1c8] sm:$0xff]
          %v1420 = vld [vmem:[#allocation9 + $0x1d0] sm:$0xff]
          %v1421 = vld [vmem:[#allocation9 + $0x1d8] sm:$0xff]
          %v1422 = vld [vmem:[#allocation9 + $0x1e0] sm:$0xff]
          %v1423 = vld [vmem:[#allocation9 + $0x1e8] sm:$0xff]
          %v1424 = vld [vmem:[#allocation9 + $0x1f0] sm:$0xff]
          %v1425 = vld [vmem:[#allocation9 + $0x1f8] sm:$0xff]
          %v1426 = vld [vmem:[%s4] sm:$0x1]
          %v1428 = vperm.slane %v1361, 0
          %v1429 = vperm.slane %v1361, 1
          %v1430 = vperm.slane %v1361, 2
          %v1431 = vperm.slane %v1361, 3
          %1436 = vmatpush.msra.mxu0 %v1377
          %1437 = vmatpush.msra.mxu0 %v1376
          %1438 = vmatpush.msra.mxu0 %v1375
          %1439 = vmatpush.msra.mxu0 %v1374
          %1440 = vmatpush.msra.mxu0 %v1373
          %1441 = vmatpush.msra.mxu0 %v1372
          %1442 = vmatpush.msra.mxu0 %v1371
          %1443 = vmatpush.msra.mxu0 %v1370
          %1444 = vmatpush.msra.mxu0 %v1369
          %1445 = vmatpush.msra.mxu0 %v1368
          %1446 = vmatpush.msra.mxu0 %v1367
          %1447 = vmatpush.msra.mxu0 %v1366
          %1448 = vmatpush.msra.mxu0 %v1365
          %1449 = vmatpush.msra.mxu0 %v1364
          %1450 = vmatpush.msra.mxu0 %v1363
          %1451 = vmatpush.msra.mxu0 %v1362
          %1452 = vmatmul.f32.gmra.mxu0 %v1428
          %v1453 = vpop.f32.mrf.mxu0
          %v1454 = vadd.f32 %v1426, %v1453
          %1455 = vdwg.mxu0
          %1456 = vmatpush.msra.mxu0 %v1393
          %1457 = vmatpush.msra.mxu0 %v1392
          %1458 = vmatpush.msra.mxu0 %v1391
          %1459 = vmatpush.msra.mxu0 %v1390
          %1460 = vmatpush.msra.mxu0 %v1389
          %1461 = vmatpush.msra.mxu0 %v1388
          %1462 = vmatpush.msra.mxu0 %v1387
          %1463 = vmatpush.msra.mxu0 %v1386
          %1464 = vmatpush.msra.mxu0 %v1385
          %1465 = vmatpush.msra.mxu0 %v1384
          %1466 = vmatpush.msra.mxu0 %v1383
          %1467 = vmatpush.msra.mxu0 %v1382
          %1468 = vmatpush.msra.mxu0 %v1381
          %1469 = vmatpush.msra.mxu0 %v1380
          %1470 = vmatpush.msra.mxu0 %v1379
          %1471 = vmatpush.msra.mxu0 %v1378
          %1472 = vmatmul.f32.gmra.mxu0 %v1429
          %v1473 = vpop.f32.mrf.mxu0
          %v1474 = vadd.f32 %v1454, %v1473
          %1475 = vdwg.mxu0
          %1476 = vmatpush.msra.mxu0 %v1409
          %1477 = vmatpush.msra.mxu0 %v1408
          %1478 = vmatpush.msra.mxu0 %v1407
          %1479 = vmatpush.msra.mxu0 %v1406
          %1480 = vmatpush.msra.mxu0 %v1405
          %1481 = vmatpush.msra.mxu0 %v1404
          %1482 = vmatpush.msra.mxu0 %v1403
          %1483 = vmatpush.msra.mxu0 %v1402
          %1484 = vmatpush.msra.mxu0 %v1401
          %1485 = vmatpush.msra.mxu0 %v1400
          %1486 = vmatpush.msra.mxu0 %v1399
          %1487 = vmatpush.msra.mxu0 %v1398
          %1488 = vmatpush.msra.mxu0 %v1397
          %1489 = vmatpush.msra.mxu0 %v1396
          %1490 = vmatpush.msra.mxu0 %v1395
          %1491 = vmatpush.msra.mxu0 %v1394
          %1492 = vmatmul.f32.gmra.mxu0 %v1430
          %v1493 = vpop.f32.mrf.mxu0
          %v1494 = vadd.f32 %v1474, %v1493
          %1495 = vdwg.mxu0
          %1496 = vmatpush.msra.mxu0 %v1425
          %1497 = vmatpush.msra.mxu0 %v1424
          %1498 = vmatpush.msra.mxu0 %v1423
          %1499 = vmatpush.msra.mxu0 %v1422
          %1500 = vmatpush.msra.mxu0 %v1421
          %1501 = vmatpush.msra.mxu0 %v1420
          %1502 = vmatpush.msra.mxu0 %v1419
          %1503 = vmatpush.msra.mxu0 %v1418
          %1504 = vmatpush.msra.mxu0 %v1417
          %1505 = vmatpush.msra.mxu0 %v1416
          %1506 = vmatpush.msra.mxu0 %v1415
          %1507 = vmatpush.msra.mxu0 %v1414
          %1508 = vmatpush.msra.mxu0 %v1413
          %1509 = vmatpush.msra.mxu0 %v1412
          %1510 = vmatpush.msra.mxu0 %v1411
          %1511 = vmatpush.msra.mxu0 %v1410
          %1512 = vmatmul.f32.gmra.mxu0 %v1431
          %v1513 = vpop.f32.mrf.mxu0
          %v1514 = vadd.f32 %v1494, %v1513
          %1515 = vdwg.mxu0
          %1516 = vst [vmem:[%s305] sm:$0x1] %v1514
        $region64: #{tpu_custom_call.1} parent=39 // pred_fallthru
          _
        %s1517 = sand.u32 %s156, 1
        %s1518 = scalar_lea.sflag [#allocation5], %s1517
        %s1519 = sand.u32 %s156, 1
        %s1520 = scalar_lea.vmem [#allocation11], %s1519
        // Predicated region
        $region65: #{tpu_custom_call.1} parent=39 // pred_check
          %p1521 = pneg %p166
        $region66: #{tpu_custom_call.1} parent=39 // pred_check_branch
          %1523 = sbr.rel (%p1521) target = $region68
        $region67: #{tpu_custom_call.1} parent=39 // pred_region
          %1525 = vsyncadd %s1518, 0
          %s1526 = scalar_lea.hbm %s5, %s28
          %s1528 = sshll.u32 %s1520, 4
          %s1529 = int_to_ptr.vmem [resolvable:$true] %s1528
          %s1530 = sshll.u32 %s1526, 4
          %s1531 = int_to_ptr.hbm [resolvable:$true] %s1530
          %1533 = dma.vmem_to_hbm [thread:$0]  %s1529, 16, %s1531, %s1518
        $region68: #{tpu_custom_call.1} parent=39 // pred_fallthru
          _
      $region40: #{tpu_custom_call.1} parent=5 // pred_fallthru
        _
      %p1534 = scmp.le.s32.totalorder 2, %s19
      // Predicated region
      $region69: #{tpu_custom_call.1} parent=5 // pred_check
        %p1535 = pneg %p1534
      $region70: #{tpu_custom_call.1} parent=5 // pred_check_branch
        %1537 = sbr.rel (%p1535) target = $region72
      $region71: #{tpu_custom_call.1} parent=5 // pred_region
        %s1538 = ssub.s32 %s19, 2
        // Predicated region
        $region73: #{tpu_custom_call.1} parent=71 // pred_check
          %p1539 = pneg %p172
        $region74: #{tpu_custom_call.1} parent=71 // pred_check_branch
          %1541 = sbr.rel (%p1539) target = $region76
        $region75: #{tpu_custom_call.1} parent=71 // pred_region
          %s1542 = sand.u32 %s157, 1
          %s1543 = scalar_lea.sflag [#allocation5], %s1542
          %s1544 = sand.u32 %s157, 1
          %s1545 = scalar_lea.vmem [#allocation11], %s1544
          %1547 = dma.done %s1543, 16
        $region76: #{tpu_custom_call.1} parent=71 // pred_fallthru
          _
      $region72: #{tpu_custom_call.1} parent=5 // pred_fallthru
        _
    $region6: #{tpu_custom_call.1} parent=1 // loop_footer
      %s23 = sadd.s32 1, %s19
    $region7: #{tpu_custom_call.1} parent=1 // loop_footer_branch
      %18 = sbr.rel target = $region3
    $region8: #{tpu_custom_call.1} parent=1 // loop_exit
      _
    %1548 = vsyncpa [#allocation4], 1
    %s1549 = scalar_lea.sflag [#allocation4], 1
    %1550 = vsyncpa %s1549, 1
    %1551 = vsyncpa [#allocation7], 1
    %1552 = vsyncpa [#allocation10], 1
    %1553 = vsyncpa [#allocation5], 1
    %s1554 = scalar_lea.sflag [#allocation5], 1
    %1555 = vsyncpa %s1554, 1

// kernel: tpu_custom_call.1
$region0: #{tpu_custom_call.1}
  #allocation0 [shape = 'u32[]', space=smem, size = 0x4, offset = 0x4, fixed_abs, tag = 'smem constant byte address 0x4 - core index']
  #allocation1 [shape = 'u32[72,128]{1,0:T(1,128)}', space=vmem, size = 0x9000, scoped, tag = 'internal scratch']
  #allocation2 [shape = 'f32[1,512]{1,0:T(1,128)}', space=vmem, size = 0x800, scoped, tag = 'scratch operand']
  %s0 = inlined_call_operand.hbm [shape: f32[2,8,512], index: 0, kind: input, shape index: {}]
  %s1 = inlined_call_operand.hbm [shape: bf16[512,512], index: 1, kind: input, shape index: {}]
  %s2 = inlined_call_operand.hbm [shape: f32[1,512], index: 2, kind: input, shape index: {}]
  %s3 = inlined_call_operand.hbm [shape: f32[512,128], index: 3, kind: input, shape index: {}]
  %s4 = inlined_call_operand.vmem [shape: f32[1,128], index: 4, kind: input, shape index: {}]
  %s5 = inlined_call_operand.hbm [shape: f32[2,1,128], index: 5, kind: output, shape index: {}]
  %s6 = sld [smem:[#allocation0]]
  $region77: #{tpu_custom_call.1} parent=0
    _
  %s8 = ssub.s32 1, %s6
  %s9 = scalar_select 0, %s8, %s6
  $region1: #{tpu_custom_call.1} parent=0
    #allocation3 [shape = 'u8[32768]{0}', space=vmem, size = 0x8000, scoped, tag = 'input window, operand 0']
    #allocation4 [shape = 's32[2]{0}', space=sflag, size = 0x8, scoped, tag = 'scoped memory for tpu_custom_call.1']
    #allocation5 [shape = 's32[2]{0}', space=sflag, size = 0x8, scoped, tag = 'scoped memory for tpu_custom_call.1']
    #allocation6 [shape = 'u8[524288]{0}', space=vmem, size = 0x80000, scoped, tag = 'input window, operand 1, single buffered']
    #allocation7 [shape = 's32[1]{0}', space=sflag, size = 0x4, scoped, tag = 'scoped memory for tpu_custom_call.1']
    #allocation8 [shape = 'u8[2048]{0}', space=vmem, size = 0x800, scoped, tag = 'input window, operand 2, single buffered']
    #allocation9 [shape = 'u8[262144]{0}', space=vmem, size = 0x40000, scoped, tag = 'input window, operand 3, single buffered']
    #allocation10 [shape = 's32[1]{0}', space=sflag, size = 0x4, scoped, tag = 'scoped memory for tpu_custom_call.1']
    #allocation11 [shape = 'u8[1024]{0}', space=vmem, size = 0x400, scoped, tag = 'output window, operand 0']
    %10 = vsyncpa [#allocation4], 0
    %s11 = scalar_lea.sflag [#allocation4], 1
    %12 = vsyncpa %s11, 0
    %13 = vsyncpa [#allocation7], 0
    %14 = vsyncpa [#allocation10], 0
    %15 = vsyncpa [#allocation5], 0
    %s16 = scalar_lea.sflag [#allocation5], 1
    %17 = vsyncpa %s16, 0
    loop: start=0, step=1, limit=4
    $region2: #{tpu_custom_call.1} parent=1 // loop_pre_header
      _
    $region3: #{tpu_custom_call.1} parent=1 // loop_header
      %s19 = sphi 0, %s23
      %p20 = scmp.ge.s32.totalorder %s19, 4
      %s26 = sphi 0, %s38
      %s27 = sphi 0, %s34
      %s28 = sphi 0, %s26
      %s29 = sphi 0, %s27
      %s30 = sphi 0, %s28
      %s31 = sphi 0, %s29
      %s43 = sphi 0, %s45
      %s46 = sphi 0, %s43
      %s47 = sphi 0, %s46
      %s63 = sphi 0, %s47
      %s67 = sphi 0, %s67
      %s69 = sphi 0, %s67
      %s70 = sphi 0, %s69
      %s84 = sphi 0, %s70
      %s88 = sphi 0, %s88
      %s90 = sphi 0, %s88
      %s91 = sphi 0, %s90
      %s105 = sphi 0, %s91
      %s109 = sphi 0, %s109
      %s111 = sphi 0, %s109
      %s112 = sphi 0, %s111
      %s126 = sphi 0, %s112
      %s130 = sphi 0, %s130
      %s132 = sphi 0, %s130
      %s133 = sphi 0, %s132
      %s147 = sphi 0, %s133
      %s153 = sphi 0, %s155
      %s156 = sphi 0, %s153
      %s157 = sphi 0, %s156
      %s173 = sphi 0, %s157
    $region4: #{tpu_custom_call.1} parent=1 // loop_header_branch
      %22 = sbr.rel (%p20) target = $region8
    $region5: #{tpu_custom_call.1} parent=1 // loop_body
      %s24 = ssub.s32 %s19, 1
      %s25 = ssub.s32 %s19, 2
      %s32 = sadd.s32 1, %s27
      %p33 = scmp.ge.s32.totalorder %s32, 1
      %s34 = scalar_select %p33, 0, %s32
      %s35 = sadd.s32 1, %s26
      %s36 = scalar_select %p33, %s35, %s26
      %p37 = scmp.ge.s32.totalorder %s36, 2
      %s38 = scalar_select %p37, 0, %s36
      %s39 = ssub.s32 %s26, %s38
      %s40 = ssub.s32 %s27, %s34
      %s41 = sor.u32 %s39, %s40
      %p42 = scmp.eq.s32.totalorder %s41, 0
      %s44 = sadd.s32 %s43, 1
      %s45 = scalar_select %p42, %s43, %s44
      %p48 = pneg %p42
      %p49 = scmp.eq.s32.totalorder %s19, 1
      %p50 = por %p48, %p49
      %p51 = scmp.ne.s32.totalorder %s43, %s46
      %p52 = scmp.eq.s32.totalorder %s19, 0
      %p53 = por %p51, %p52
      %p54 = scmp.ne.s32.totalorder %s43, %s46
      %p55 = scmp.eq.s32.totalorder %s24, 1
      %p56 = por %p54, %p55
      %p57 = scmp.ne.s32.totalorder %s46, %s47
      %p58 = scmp.eq.s32.totalorder %s24, 0
      %p59 = por %p57, %p58
      %p60 = scmp.ne.s32.totalorder %s46, %s47
      %p61 = scmp.eq.s32.totalorder %s25, 1
      %p62 = por %p60, %p61
      %p64 = scmp.ne.s32.totalorder %s47, %s63
      %p65 = scmp.eq.s32.totalorder %s25, 0
      %p66 = por %p64, %p65
      %s68 = sadd.s32 %s67, 1
      %p71 = scmp.eq.s32.totalorder %s19, 1
      %p72 = scmp.ne.s32.totalorder %s67, %s69
      %p73 = scmp.eq.s32.totalorder %s19, 0
      %p74 = por %p72, %p73
      %p75 = scmp.ne.s32.totalorder %s67, %s69
      %p76 = scmp.eq.s32.totalorder %s24, 1
      %p77 = por %p75, %p76
      %p78 = scmp.ne.s32.totalorder %s69, %s70
      %p79 = scmp.eq.s32.totalorder %s24, 0
      %p80 = por %p78, %p79
      %p81 = scmp.ne.s32.totalorder %s69, %s70
      %p82 = scmp.eq.s32.totalorder %s25, 1
      %p83 = por %p81, %p82
      %p85 = scmp.ne.s32.totalorder %s70, %s84
      %p86 = scmp.eq.s32.totalorder %s25, 0
      %p87 = por %p85, %p86
      %s89 = sadd.s32 %s88, 1
      %p92 = scmp.eq.s32.totalorder %s19, 1
      %p93 = scmp.ne.s32.totalorder %s88, %s90
      %p94 = scmp.eq.s32.totalorder %s19, 0
      %p95 = por %p93, %p94
      %p96 = scmp.ne.s32.totalorder %s88, %s90
      %p97 = scmp.eq.s32.totalorder %s24, 1
      %p98 = por %p96, %p97
      %p99 = scmp.ne.s32.totalorder %s90, %s91
      %p100 = scmp.eq.s32.totalorder %s24, 0
      %p101 = por %p99, %p100
      %p102 = scmp.ne.s32.totalorder %s90, %s91
      %p103 = scmp.eq.s32.totalorder %s25, 1
      %p104 = por %p102, %p103
      %p106 = scmp.ne.s32.totalorder %s91, %s105
      %p107 = scmp.eq.s32.totalorder %s25, 0
      %p108 = por %p106, %p107
      %s110 = sadd.s32 %s109, 1
      %p113 = scmp.eq.s32.totalorder %s19, 1
      %p114 = scmp.ne.s32.totalorder %s109, %s111
      %p115 = scmp.eq.s32.totalorder %s19, 0
      %p116 = por %p114, %p115
      %p117 = scmp.ne.s32.totalorder %s109, %s111
      %p118 = scmp.eq.s32.totalorder %s24, 1
      %p119 = por %p117, %p118
      %p120 = scmp.ne.s32.totalorder %s111, %s112
      %p121 = scmp.eq.s32.totalorder %s24, 0
      %p122 = por %p120, %p121
      %p123 = scmp.ne.s32.totalorder %s111, %s112
      %p124 = scmp.eq.s32.totalorder %s25, 1
      %p125 = por %p123, %p124
      %p127 = scmp.ne.s32.totalorder %s112, %s126
      %p128 = scmp.eq.s32.totalorder %s25, 0
      %p129 = por %p127, %p128
      %s131 = sadd.s32 %s130, 1
      %p134 = scmp.eq.s32.totalorder %s19, 1
      %p135 = scmp.ne.s32.totalorder %s130, %s132
      %p136 = scmp.eq.s32.totalorder %s19, 0
      %p137 = por %p135, %p136
      %p138 = scmp.ne.s32.totalorder %s130, %s132
      %p139 = scmp.eq.s32.totalorder %s24, 1
      %p140 = por %p138, %p139
      %p141 = scmp.ne.s32.totalorder %s132, %s133
      %p142 = scmp.eq.s32.totalorder %s24, 0
      %p143 = por %p141, %p142
      %p144 = scmp.ne.s32.totalorder %s132, %s133
      %p145 = scmp.eq.s32.totalorder %s25, 1
      %p146 = por %p144, %p145
      %p148 = scmp.ne.s32.totalorder %s133, %s147
      %p149 = scmp.eq.s32.totalorder %s25, 0
      %p150 = por %p148, %p149
      %s151 = ssub.s32 %s26, %s38
      %p152 = scmp.eq.s32.totalorder %s151, 0
      %s154 = sadd.s32 %s153, 1
      %s155 = scalar_select %p152, %s153, %s154
      %p158 = pneg %p152
      %p159 = scmp.eq.s32.totalorder %s19, 1
      %p160 = por %p158, %p159
      %p161 = scmp.ne.s32.totalorder %s153, %s156
      %p162 = scmp.eq.s32.totalorder %s19, 0
      %p163 = por %p161, %p162
      %p164 = scmp.ne.s32.totalorder %s153, %s156
      %p165 = scmp.eq.s32.totalorder %s24, 1
      %p166 = por %p164, %p165
      %p167 = scmp.ne.s32.totalorder %s156, %s157
      %p168 = scmp.eq.s32.totalorder %s24, 0
      %p169 = por %p167, %p168
      %p170 = scmp.ne.s32.totalorder %s156, %s157
      %p171 = scmp.eq.s32.totalorder %s25, 1
      %p172 = por %p170, %p171
      %p174 = scmp.ne.s32.totalorder %s157, %s173
      %p175 = scmp.eq.s32.totalorder %s25, 0
      %p176 = por %p174, %p175
      %p177 = scmp.le.s32.totalorder 1, %s19
      %p178 = scmp.lt.s32.totalorder %s19, 3
      %p179 = pnand %p177, %p178
      %p180 = pneg %p179
      // Predicated region
      $region9: #{tpu_custom_call.1} parent=5 // pred_check
        _
      $region10: #{tpu_custom_call.1} parent=5 // pred_check_branch
        %182 = sbr.rel (%p179) target = $region12
      $region11: #{tpu_custom_call.1} parent=5 // pred_region
        %s183 = ssub.s32 %s19, 1
        // Predicated region
        $region13: #{tpu_custom_call.1} parent=11 // pred_check
          %p184 = pneg %p80
        $region14: #{tpu_custom_call.1} parent=11 // pred_check_branch
          %186 = sbr.rel (%p184) target = $region16
        $region15: #{tpu_custom_call.1} parent=11 // pred_region
          %188 = vsyncadd [#allocation7], 0
          %s189 = sshll.u32 %s1, 4
          %s190 = int_to_ptr.hbm [resolvable:$true] %s189
          %s191 = sshll.u32 [#allocation6], 4
          %s192 = int_to_ptr.vmem [resolvable:$true] %s191
          %197 = dma.hbm_to_vmem [thread:$0]  %s190, 16384, %s192, [#allocation7], 256, 256, 16
        $region16: #{tpu_custom_call.1} parent=11 // pred_fallthru
          _
        // Predicated region
        $region17: #{tpu_custom_call.1} parent=11 // pred_check
          %p198 = pneg %p101
        $region18: #{tpu_custom_call.1} parent=11 // pred_check_branch
          %200 = sbr.rel (%p198) target = $region20
        $region19: #{tpu_custom_call.1} parent=11 // pred_region
          %202 = vsyncadd [#allocation7], 0
          %s204 = sshll.u32 %s2, 4
          %s205 = int_to_ptr.hbm [resolvable:$true] %s204
          %s206 = sshll.u32 [#allocation8], 4
          %s207 = int_to_ptr.vmem [resolvable:$true] %s206
          %209 = dma.hbm_to_vmem [thread:$0]  %s205, 64, %s207, [#allocation7]
        $region20: #{tpu_custom_call.1} parent=11 // pred_fallthru
          _
        // Predicated region
        $region21: #{tpu_custom_call.1} parent=11 // pred_check
          %p210 = pneg %p122
        $region22: #{tpu_custom_call.1} parent=11 // pred_check_branch
          %212 = sbr.rel (%p210) target = $region24
        $region23: #{tpu_custom_call.1} parent=11 // pred_region
          %214 = vsyncadd [#allocation10], 0
          %s215 = sshll.u32 %s3, 4
          %s216 = int_to_ptr.hbm [resolvable:$true] %s215
          %s217 = sshll.u32 [#allocation9], 4
          %s218 = int_to_ptr.vmem [resolvable:$true] %s217
          %223 = dma.hbm_to_vmem [thread:$0]  %s216, 8192, %s218, [#allocation10], 128, 128, 8
        $region24: #{tpu_custom_call.1} parent=11 // pred_fallthru
          _
        // Predicated region
        $region25: #{tpu_custom_call.1} parent=11 // pred_check
          %p224 = pneg %p143
        $region26: #{tpu_custom_call.1} parent=11 // pred_check_branch
          %226 = sbr.rel (%p224) target = $region28
        $region27: #{tpu_custom_call.1} parent=11 // pred_region
          _
        $region28: #{tpu_custom_call.1} parent=11 // pred_fallthru
          _
      $region12: #{tpu_custom_call.1} parent=5 // pred_fallthru
        _
      %p227 = scmp.lt.s32.totalorder %s19, 2
      // Predicated region
      $region29: #{tpu_custom_call.1} parent=5 // pred_check
        %p228 = pneg %p227
      $region30: #{tpu_custom_call.1} parent=5 // pred_check_branch
        %230 = sbr.rel (%p228) target = $region32
      $region31: #{tpu_custom_call.1} parent=5 // pred_region
        // Predicated region
        $region33: #{tpu_custom_call.1} parent=31 // pred_check
          %p231 = pneg %p53
        $region34: #{tpu_custom_call.1} parent=31 // pred_check_branch
          %233 = sbr.rel (%p231) target = $region36
        $region35: #{tpu_custom_call.1} parent=31 // pred_region
          %s234 = sand.u32 %s43, 1
          %s235 = scalar_lea.sflag [#allocation4], %s234
          %s236 = sand.u32 %s43, 1
          %s237 = smul.addr %s236, 32
          %s238 = scalar_lea.vmem [#allocation3], %s237
          %240 = vsyncadd %s235, 0
          %s241 = smul.addr %s27, 4
          %s242 = smul.addr %s26, 4
          %s243 = sadd.s32 %s241, %s242
          %s244 = smul.addr %s243, 8
          %s245 = scalar_lea.hbm %s0, %s244
          %s247 = sshll.u32 %s245, 4
          %s248 = int_to_ptr.hbm [resolvable:$true] %s247
          %s249 = sshll.u32 %s238, 4
          %s250 = int_to_ptr.vmem [resolvable:$true] %s249
          %252 = dma.hbm_to_vmem [thread:$0]  %s248, 512, %s250, %s235
        $region36: #{tpu_custom_call.1} parent=31 // pred_fallthru
          _
      $region32: #{tpu_custom_call.1} parent=5 // pred_fallthru
        _
      %p253 = scmp.le.s32.totalorder 1, %s19
      %p254 = scmp.lt.s32.totalorder %s19, 3
      %p255 = pnand %p253, %p254
      %p256 = pneg %p255
      // Predicated region
      $region37: #{tpu_custom_call.1} parent=5 // pred_check
        _
      $region38: #{tpu_custom_call.1} parent=5 // pred_check_branch
        %258 = sbr.rel (%p255) target = $region40
      $region39: #{tpu_custom_call.1} parent=5 // pred_region
        %s259 = ssub.s32 %s19, 1
        %s260 = sand.u32 %s46, 1
        %s261 = scalar_lea.sflag [#allocation4], %s260
        %s262 = sand.u32 %s46, 1
        %s263 = smul.addr %s262, 32
        %s264 = scalar_lea.vmem [#allocation3], %s263
        // Predicated region
        $region41: #{tpu_custom_call.1} parent=39 // pred_check
          %p265 = pneg %p59
        $region42: #{tpu_custom_call.1} parent=39 // pred_check_branch
          %267 = sbr.rel (%p265) target = $region44
        $region43: #{tpu_custom_call.1} parent=39 // pred_region
          %269 = dma.done %s261, 512
        $region44: #{tpu_custom_call.1} parent=39 // pred_fallthru
          _
        // Predicated region
        $region45: #{tpu_custom_call.1} parent=39 // pred_check
          %p270 = pneg %p80
        $region46: #{tpu_custom_call.1} parent=39 // pred_check_branch
          %272 = sbr.rel (%p270) target = $region48
        $region47: #{tpu_custom_call.1} parent=39 // pred_region
          %274 = dma.done [#allocation7], 16384
        $region48: #{tpu_custom_call.1} parent=39 // pred_fallthru
          _
        // Predicated region
        $region49: #{tpu_custom_call.1} parent=39 // pred_check
          %p275 = pneg %p101
        $region50: #{tpu_custom_call.1} parent=39 // pred_check_branch
          %277 = sbr.rel (%p275) target = $region52
        $region51: #{tpu_custom_call.1} parent=39 // pred_region
          %279 = dma.done [#allocation7], 64
        $region52: #{tpu_custom_call.1} parent=39 // pred_fallthru
          _
        // Predicated region
        $region53: #{tpu_custom_call.1} parent=39 // pred_check
          %p280 = pneg %p122
        $region54: #{tpu_custom_call.1} parent=39 // pred_check_branch
          %282 = sbr.rel (%p280) target = $region56
        $region55: #{tpu_custom_call.1} parent=39 // pred_region
          %284 = dma.done [#allocation10], 8192
        $region56: #{tpu_custom_call.1} parent=39 // pred_fallthru
          _
        %s285 = sand.u32 %s46, 1
        %s286 = scalar_lea.sflag [#allocation4], %s285
        %s287 = sand.u32 %s46, 1
        %s288 = smul.addr %s287, 32
        %s289 = scalar_lea.vmem [#allocation3], %s288
        %p290 = pneg %p59
        %p291 = pneg %p56
        %p292 = pneg %p80
        %p293 = pneg %p77
        %p294 = pneg %p101
        %p295 = pneg %p98
        %p296 = pneg %p122
        %p297 = pneg %p119
        %p298 = pneg %p143
        %p299 = pneg %p140
        %p300 = pneg %p169
        %p301 = pneg %p166
        %s302 = sand.u32 %s156, 1
        %s303 = scalar_lea.sflag [#allocation5], %s302
        %s304 = sand.u32 %s156, 1
        %s305 = scalar_lea.vmem [#allocation11], %s304
        %p306 = scmp.eq.s32.totalorder %s29, 0
        // Predicated region
        $region57: #{tpu_custom_call.1} parent=39 // pred_check
          %p307 = pneg %p306
        $region58: #{tpu_custom_call.1} parent=39 // pred_check_branch
          %309 = sbr.rel (%p307) target = $region60
        $region59: #{tpu_custom_call.1} parent=39 // pred_region
          %v310 = vlaneseq
          %vm311 = vcmp.ge.s32.totalorder %v310, 0
          %vm312 = vcmp.lt.s32.totalorder %v310, 512
          %vm313 = vmand %vm311, %vm312
          %314 = vst.msk [vmem:[#allocation2] sm:$0xf] %vm313, 0.0
        $region60: #{tpu_custom_call.1} parent=39 // pred_fallthru
          _
        %v315 = vld [vmem:[%s264] sm:$0xff]
        %v316 = vld [vmem:[%s264 + $0x8] sm:$0xff]
        %v317 = vld [vmem:[%s264 + $0x10] sm:$0xff]
        %v318 = vld [vmem:[%s264 + $0x18] sm:$0xff]
        %v319 = vpack.c.bf16 %v315, %v315
        %v320 = vpack.c.bf16 %v316, %v316
        %v321 = vpack.c.bf16 %v317, %v317
        %v322 = vpack.c.bf16 %v318, %v318
        %v323 = vld [vmem:[#allocation6] sm:$0xff]
        %v324 = vld [vmem:[#allocation6 + $0x8] sm:$0xff]
        %v325 = vld [vmem:[#allocation6 + $0x10] sm:$0xff]
        %v326 = vld [vmem:[#allocation6 + $0x18] sm:$0xff]
        %v327 = vld [vmem:[#allocation6 + $0x20] sm:$0xff]
        %v328 = vld [vmem:[#allocation6 + $0x28] sm:$0xff]
        %v329 = vld [vmem:[#allocation6 + $0x30] sm:$0xff]
        %v330 = vld [vmem:[#allocation6 + $0x38] sm:$0xff]
        %v331 = vld [vmem:[#allocation6 + $0x40] sm:$0xff]
        %v332 = vld [vmem:[#allocation6 + $0x48] sm:$0xff]
        %v333 = vld [vmem:[#allocation6 + $0x50] sm:$0xff]
        %v334 = vld [vmem:[#allocation6 + $0x58] sm:$0xff]
        %v335 = vld [vmem:[#allocation6 + $0x60] sm:$0xff]
        %v336 = vld [vmem:[#allocation6 + $0x68] sm:$0xff]
        %v337 = vld [vmem:[#allocation6 + $0x70] sm:$0xff]
        %v338 = vld [vmem:[#allocation6 + $0x78] sm:$0xff]
        %v339 = vld [vmem:[#allocation6 + $0x80] sm:$0xff]
        %v340 = vld [vmem:[#allocation6 + $0x88] sm:$0xff]
        %v341 = vld [vmem:[#allocation6 + $0x90] sm:$0xff]
        %v342 = vld [vmem:[#allocation6 + $0x98] sm:$0xff]
        %v343 = vld [vmem:[#allocation6 + $0xa0] sm:$0xff]
        %v344 = vld [vmem:[#allocation6 + $0xa8] sm:$0xff]
        %v345 = vld [vmem:[#allocation6 + $0xb0] sm:$0xff]
        %v346 = vld [vmem:[#allocation6 + $0xb8] sm:$0xff]
        %v347 = vld [vmem:[#allocation6 + $0xc0] sm:$0xff]
        %v348 = vld [vmem:[#allocation6 + $0xc8] sm:$0xff]
        %v349 = vld [vmem:[#allocation6 + $0xd0] sm:$0xff]
        %v350 = vld [vmem:[#allocation6 + $0xd8] sm:$0xff]
        %v351 = vld [vmem:[#allocation6 + $0xe0] sm:$0xff]
        %v352 = vld [vmem:[#allocation6 + $0xe8] sm:$0xff]
        %v353 = vld [vmem:[#allocation6 + $0xf0] sm:$0xff]
        %v354 = vld [vmem:[#allocation6 + $0xf8] sm:$0xff]
        %v355 = vld [vmem:[#allocation6 + $0x100] sm:$0xff]
        %v356 = vld [vmem:[#allocation6 + $0x108] sm:$0xff]
        %v357 = vld [vmem:[#allocation6 + $0x110] sm:$0xff]
        %v358 = vld [vmem:[#allocation6 + $0x118] sm:$0xff]
        %v359 = vld [vmem:[#allocation6 + $0x120] sm:$0xff]
        %v360 = vld [vmem:[#allocation6 + $0x128] sm:$0xff]
        %v361 = vld [vmem:[#allocation6 + $0x130] sm:$0xff]
        %v362 = vld [vmem:[#allocation6 + $0x138] sm:$0xff]
        %v363 = vld [vmem:[#allocation6 + $0x140] sm:$0xff]
        %v364 = vld [vmem:[#allocation6 + $0x148] sm:$0xff]
        %v365 = vld [vmem:[#allocation6 + $0x150] sm:$0xff]
        %v366 = vld [vmem:[#allocation6 + $0x158] sm:$0xff]
        %v367 = vld [vmem:[#allocation6 + $0x160] sm:$0xff]
        %v368 = vld [vmem:[#allocation6 + $0x168] sm:$0xff]
        %v369 = vld [vmem:[#allocation6 + $0x170] sm:$0xff]
        %v370 = vld [vmem:[#allocation6 + $0x178] sm:$0xff]
        %v371 = vld [vmem:[#allocation6 + $0x180] sm:$0xff]
        %v372 = vld [vmem:[#allocation6 + $0x188] sm:$0xff]
        %v373 = vld [vmem:[#allocation6 + $0x190] sm:$0xff]
        %v374 = vld [vmem:[#allocation6 + $0x198] sm:$0xff]
        %v375 = vld [vmem:[#allocation6 + $0x1a0] sm:$0xff]
        %v376 = vld [vmem:[#allocation6 + $0x1a8] sm:$0xff]
        %v377 = vld [vmem:[#allocation6 + $0x1b0] sm:$0xff]
        %v378 = vld [vmem:[#allocation6 + $0x1b8] sm:$0xff]
        %v379 = vld [vmem:[#allocation6 + $0x1c0] sm:$0xff]
        %v380 = vld [vmem:[#allocation6 + $0x1c8] sm:$0xff]
        %v381 = vld [vmem:[#allocation6 + $0x1d0] sm:$0xff]
        %v382 = vld [vmem:[#allocation6 + $0x1d8] sm:$0xff]
        %v383 = vld [vmem:[#allocation6 + $0x1e0] sm:$0xff]
        %v384 = vld [vmem:[#allocation6 + $0x1e8] sm:$0xff]
        %v385 = vld [vmem:[#allocation6 + $0x1f0] sm:$0xff]
        %v386 = vld [vmem:[#allocation6 + $0x1f8] sm:$0xff]
        %v387 = vld [vmem:[#allocation6 + $0x200] sm:$0xff]
        %v388 = vld [vmem:[#allocation6 + $0x208] sm:$0xff]
        %v389 = vld [vmem:[#allocation6 + $0x210] sm:$0xff]
        %v390 = vld [vmem:[#allocation6 + $0x218] sm:$0xff]
        %v391 = vld [vmem:[#allocation6 + $0x220] sm:$0xff]
        %v392 = vld [vmem:[#allocation6 + $0x228] sm:$0xff]
        %v393 = vld [vmem:[#allocation6 + $0x230] sm:$0xff]
        %v394 = vld [vmem:[#allocation6 + $0x238] sm:$0xff]
        %v395 = vld [vmem:[#allocation6 + $0x240] sm:$0xff]
        %v396 = vld [vmem:[#allocation6 + $0x248] sm:$0xff]
        %v397 = vld [vmem:[#allocation6 + $0x250] sm:$0xff]
        %v398 = vld [vmem:[#allocation6 + $0x258] sm:$0xff]
        %v399 = vld [vmem:[#allocation6 + $0x260] sm:$0xff]
        %v400 = vld [vmem:[#allocation6 + $0x268] sm:$0xff]
        %v401 = vld [vmem:[#allocation6 + $0x270] sm:$0xff]
        %v402 = vld [vmem:[#allocation6 + $0x278] sm:$0xff]
        %v403 = vld [vmem:[#allocation6 + $0x280] sm:$0xff]
        %v404 = vld [vmem:[#allocation6 + $0x288] sm:$0xff]
        %v405 = vld [vmem:[#allocation6 + $0x290] sm:$0xff]
        %v406 = vld [vmem:[#allocation6 + $0x298] sm:$0xff]
        %v407 = vld [vmem:[#allocation6 + $0x2a0] sm:$0xff]
        %v408 = vld [vmem:[#allocation6 + $0x2a8] sm:$0xff]
        %v409 = vld [vmem:[#allocation6 + $0x2b0] sm:$0xff]
        %v410 = vld [vmem:[#allocation6 + $0x2b8] sm:$0xff]
        %v411 = vld [vmem:[#allocation6 + $0x2c0] sm:$0xff]
        %v412 = vld [vmem:[#allocation6 + $0x2c8] sm:$0xff]
        %v413 = vld [vmem:[#allocation6 + $0x2d0] sm:$0xff]
        %v414 = vld [vmem:[#allocation6 + $0x2d8] sm:$0xff]
        %v415 = vld [vmem:[#allocation6 + $0x2e0] sm:$0xff]
        %v416 = vld [vmem:[#allocation6 + $0x2e8] sm:$0xff]
        %v417 = vld [vmem:[#allocation6 + $0x2f0] sm:$0xff]
        %v418 = vld [vmem:[#allocation6 + $0x2f8] sm:$0xff]
        %v419 = vld [vmem:[#allocation6 + $0x300] sm:$0xff]
        %v420 = vld [vmem:[#allocation6 + $0x308] sm:$0xff]
        %v421 = vld [vmem:[#allocation6 + $0x310] sm:$0xff]
        %v422 = vld [vmem:[#allocation6 + $0x318] sm:$0xff]
        %v423 = vld [vmem:[#allocation6 + $0x320] sm:$0xff]
        %v424 = vld [vmem:[#allocation6 + $0x328] sm:$0xff]
        %v425 = vld [vmem:[#allocation6 + $0x330] sm:$0xff]
        %v426 = vld [vmem:[#allocation6 + $0x338] sm:$0xff]
        %v427 = vld [vmem:[#allocation6 + $0x340] sm:$0xff]
        %v428 = vld [vmem:[#allocation6 + $0x348] sm:$0xff]
        %v429 = vld [vmem:[#allocation6 + $0x350] sm:$0xff]
        %v430 = vld [vmem:[#allocation6 + $0x358] sm:$0xff]
        %v431 = vld [vmem:[#allocation6 + $0x360] sm:$0xff]
        %v432 = vld [vmem:[#allocation6 + $0x368] sm:$0xff]
        %v433 = vld [vmem:[#allocation6 + $0x370] sm:$0xff]
        %v434 = vld [vmem:[#allocation6 + $0x378] sm:$0xff]
        %v435 = vld [vmem:[#allocation6 + $0x380] sm:$0xff]
        %v436 = vld [vmem:[#allocation6 + $0x388] sm:$0xff]
        %v437 = vld [vmem:[#allocation6 + $0x390] sm:$0xff]
        %v438 = vld [vmem:[#allocation6 + $0x398] sm:$0xff]
        %v439 = vld [vmem:[#allocation6 + $0x3a0] sm:$0xff]
        %v440 = vld [vmem:[#allocation6 + $0x3a8] sm:$0xff]
        %v441 = vld [vmem:[#allocation6 + $0x3b0] sm:$0xff]
        %v442 = vld [vmem:[#allocation6 + $0x3b8] sm:$0xff]
        %v443 = vld [vmem:[#allocation6 + $0x3c0] sm:$0xff]
        %v444 = vld [vmem:[#allocation6 + $0x3c8] sm:$0xff]
        %v445 = vld [vmem:[#allocation6 + $0x3d0] sm:$0xff]
        %v446 = vld [vmem:[#allocation6 + $0x3d8] sm:$0xff]
        %v447 = vld [vmem:[#allocation6 + $0x3e0] sm:$0xff]
        %v448 = vld [vmem:[#allocation6 + $0x3e8] sm:$0xff]
        %v449 = vld [vmem:[#allocation6 + $0x3f0] sm:$0xff]
        %v450 = vld [vmem:[#allocation6 + $0x3f8] sm:$0xff]
        %v451 = vld [vmem:[#allocation8] sm:$0xf]
        %v453 = vperm.slane %v451, 0
        %v454 = vperm.slane %v451, 1
        %v455 = vperm.slane %v451, 2
        %v456 = vperm.slane %v451, 3
        %v589 = vunpack.c.l.b16 %v323
        %v590 = vunpack.c.h.b16 %v323
        %v591 = vunpack.c.l.b16 %v324
        %v592 = vunpack.c.h.b16 %v324
        %v593 = vunpack.c.l.b16 %v325
        %v594 = vunpack.c.h.b16 %v325
        %v595 = vunpack.c.l.b16 %v326
        %v596 = vunpack.c.h.b16 %v326
        %v597 = vunpack.c.l.b16 %v327
        %v598 = vunpack.c.h.b16 %v327
        %v599 = vunpack.c.l.b16 %v328
        %v600 = vunpack.c.h.b16 %v328
        %v601 = vunpack.c.l.b16 %v329
        %v602 = vunpack.c.h.b16 %v329
        %v603 = vunpack.c.l.b16 %v330
        %v604 = vunpack.c.h.b16 %v330
        %v605 = vunpack.c.l.b16 %v331
        %v606 = vunpack.c.h.b16 %v331
        %v607 = vunpack.c.l.b16 %v332
        %v608 = vunpack.c.h.b16 %v332
        %v609 = vunpack.c.l.b16 %v333
        %v610 = vunpack.c.h.b16 %v333
        %v611 = vunpack.c.l.b16 %v334
        %v612 = vunpack.c.h.b16 %v334
        %v613 = vunpack.c.l.b16 %v335
        %v614 = vunpack.c.h.b16 %v335
        %v615 = vunpack.c.l.b16 %v336
        %v616 = vunpack.c.h.b16 %v336
        %v617 = vunpack.c.l.b16 %v337
        %v618 = vunpack.c.h.b16 %v337
        %v619 = vunpack.c.l.b16 %v338
        %v620 = vunpack.c.h.b16 %v338
        %v621 = vunpack.c.l.b16 %v339
        %v622 = vunpack.c.h.b16 %v339
        %v623 = vunpack.c.l.b16 %v340
        %v624 = vunpack.c.h.b16 %v340
        %v625 = vunpack.c.l.b16 %v341
        %v626 = vunpack.c.h.b16 %v341
        %v627 = vunpack.c.l.b16 %v342
        %v628 = vunpack.c.h.b16 %v342
        %v629 = vunpack.c.l.b16 %v343
        %v630 = vunpack.c.h.b16 %v343
        %v631 = vunpack.c.l.b16 %v344
        %v632 = vunpack.c.h.b16 %v344
        %v633 = vunpack.c.l.b16 %v345
        %v634 = vunpack.c.h.b16 %v345
        %v635 = vunpack.c.l.b16 %v346
        %v636 = vunpack.c.h.b16 %v346
        %v637 = vunpack.c.l.b16 %v347
        %v638 = vunpack.c.h.b16 %v347
        %v639 = vunpack.c.l.b16 %v348
        %v640 = vunpack.c.h.b16 %v348
        %v641 = vunpack.c.l.b16 %v349
        %v642 = vunpack.c.h.b16 %v349
        %v643 = vunpack.c.l.b16 %v350
        %v644 = vunpack.c.h.b16 %v350
        %v645 = vunpack.c.l.b16 %v351
        %v646 = vunpack.c.h.b16 %v351
        %v647 = vunpack.c.l.b16 %v352
        %v648 = vunpack.c.h.b16 %v352
        %v649 = vunpack.c.l.b16 %v353
        %v650 = vunpack.c.h.b16 %v353
        %v651 = vunpack.c.l.b16 %v354
        %v652 = vunpack.c.h.b16 %v354
        %v653 = vunpack.c.l.b16 %v355
        %v654 = vunpack.c.h.b16 %v355
        %v655 = vunpack.c.l.b16 %v356
        %v656 = vunpack.c.h.b16 %v356
        %v657 = vunpack.c.l.b16 %v357
        %v658 = vunpack.c.h.b16 %v357
        %v659 = vunpack.c.l.b16 %v358
        %v660 = vunpack.c.h.b16 %v358
        %v661 = vunpack.c.l.b16 %v359
        %v662 = vunpack.c.h.b16 %v359
        %v663 = vunpack.c.l.b16 %v360
        %v664 = vunpack.c.h.b16 %v360
        %v665 = vunpack.c.l.b16 %v361
        %v666 = vunpack.c.h.b16 %v361
        %v667 = vunpack.c.l.b16 %v362
        %v668 = vunpack.c.h.b16 %v362
        %v669 = vunpack.c.l.b16 %v363
        %v670 = vunpack.c.h.b16 %v363
        %v671 = vunpack.c.l.b16 %v364
        %v672 = vunpack.c.h.b16 %v364
        %v673 = vunpack.c.l.b16 %v365
        %v674 = vunpack.c.h.b16 %v365
        %v675 = vunpack.c.l.b16 %v366
        %v676 = vunpack.c.h.b16 %v366
        %v677 = vunpack.c.l.b16 %v367
        %v678 = vunpack.c.h.b16 %v367
        %v679 = vunpack.c.l.b16 %v368
        %v680 = vunpack.c.h.b16 %v368
        %v681 = vunpack.c.l.b16 %v369
        %v682 = vunpack.c.h.b16 %v369
        %v683 = vunpack.c.l.b16 %v370
        %v684 = vunpack.c.h.b16 %v370
        %v685 = vunpack.c.l.b16 %v371
        %v686 = vunpack.c.h.b16 %v371
        %v687 = vunpack.c.l.b16 %v372
        %v688 = vunpack.c.h.b16 %v372
        %v689 = vunpack.c.l.b16 %v373
        %v690 = vunpack.c.h.b16 %v373
        %v691 = vunpack.c.l.b16 %v374
        %v692 = vunpack.c.h.b16 %v374
        %v693 = vunpack.c.l.b16 %v375
        %v694 = vunpack.c.h.b16 %v375
        %v695 = vunpack.c.l.b16 %v376
        %v696 = vunpack.c.h.b16 %v376
        %v697 = vunpack.c.l.b16 %v377
        %v698 = vunpack.c.h.b16 %v377
        %v699 = vunpack.c.l.b16 %v378
        %v700 = vunpack.c.h.b16 %v378
        %v701 = vunpack.c.l.b16 %v379
        %v702 = vunpack.c.h.b16 %v379
        %v703 = vunpack.c.l.b16 %v380
        %v704 = vunpack.c.h.b16 %v380
        %v705 = vunpack.c.l.b16 %v381
        %v706 = vunpack.c.h.b16 %v381
        %v707 = vunpack.c.l.b16 %v382
        %v708 = vunpack.c.h.b16 %v382
        %v709 = vunpack.c.l.b16 %v383
        %v710 = vunpack.c.h.b16 %v383
        %v711 = vunpack.c.l.b16 %v384
        %v712 = vunpack.c.h.b16 %v384
        %v713 = vunpack.c.l.b16 %v385
        %v714 = vunpack.c.h.b16 %v385
        %v715 = vunpack.c.l.b16 %v386
        %v716 = vunpack.c.h.b16 %v386
        %v717 = vunpack.c.l.b16 %v387
        %v718 = vunpack.c.h.b16 %v387
        %v719 = vunpack.c.l.b16 %v388
        %v720 = vunpack.c.h.b16 %v388
        %v721 = vunpack.c.l.b16 %v389
        %v722 = vunpack.c.h.b16 %v389
        %v723 = vunpack.c.l.b16 %v390
        %v724 = vunpack.c.h.b16 %v390
        %v725 = vunpack.c.l.b16 %v391
        %v726 = vunpack.c.h.b16 %v391
        %v727 = vunpack.c.l.b16 %v392
        %v728 = vunpack.c.h.b16 %v392
        %v729 = vunpack.c.l.b16 %v393
        %v730 = vunpack.c.h.b16 %v393
        %v731 = vunpack.c.l.b16 %v394
        %v732 = vunpack.c.h.b16 %v394
        %v733 = vunpack.c.l.b16 %v395
        %v734 = vunpack.c.h.b16 %v395
        %v735 = vunpack.c.l.b16 %v396
        %v736 = vunpack.c.h.b16 %v396
        %v737 = vunpack.c.l.b16 %v397
        %v738 = vunpack.c.h.b16 %v397
        %v739 = vunpack.c.l.b16 %v398
        %v740 = vunpack.c.h.b16 %v398
        %v741 = vunpack.c.l.b16 %v399
        %v742 = vunpack.c.h.b16 %v399
        %v743 = vunpack.c.l.b16 %v400
        %v744 = vunpack.c.h.b16 %v400
        %v745 = vunpack.c.l.b16 %v401
        %v746 = vunpack.c.h.b16 %v401
        %v747 = vunpack.c.l.b16 %v402
        %v748 = vunpack.c.h.b16 %v402
        %v749 = vunpack.c.l.b16 %v403
        %v750 = vunpack.c.h.b16 %v403
        %v751 = vunpack.c.l.b16 %v404
        %v752 = vunpack.c.h.b16 %v404
        %v753 = vunpack.c.l.b16 %v405
        %v754 = vunpack.c.h.b16 %v405
        %v755 = vunpack.c.l.b16 %v406
        %v756 = vunpack.c.h.b16 %v406
        %v757 = vunpack.c.l.b16 %v407
        %v758 = vunpack.c.h.b16 %v407
        %v759 = vunpack.c.l.b16 %v408
        %v760 = vunpack.c.h.b16 %v408
        %v761 = vunpack.c.l.b16 %v409
        %v762 = vunpack.c.h.b16 %v409
        %v763 = vunpack.c.l.b16 %v410
        %v764 = vunpack.c.h.b16 %v410
        %v765 = vunpack.c.l.b16 %v411
        %v766 = vunpack.c.h.b16 %v411
        %v767 = vunpack.c.l.b16 %v412
        %v768 = vunpack.c.h.b16 %v412
        %v769 = vunpack.c.l.b16 %v413
        %v770 = vunpack.c.h.b16 %v413
        %v771 = vunpack.c.l.b16 %v414
        %v772 = vunpack.c.h.b16 %v414
        %v773 = vunpack.c.l.b16 %v415
        %v774 = vunpack.c.h.b16 %v415
        %v775 = vunpack.c.l.b16 %v416
        %v776 = vunpack.c.h.b16 %v416
        %v777 = vunpack.c.l.b16 %v417
        %v778 = vunpack.c.h.b16 %v417
        %v779 = vunpack.c.l.b16 %v418
        %v780 = vunpack.c.h.b16 %v418
        %v781 = vunpack.c.l.b16 %v419
        %v782 = vunpack.c.h.b16 %v419
        %v783 = vunpack.c.l.b16 %v420
        %v784 = vunpack.c.h.b16 %v420
        %v785 = vunpack.c.l.b16 %v421
        %v786 = vunpack.c.h.b16 %v421
        %v787 = vunpack.c.l.b16 %v422
        %v788 = vunpack.c.h.b16 %v422
        %v789 = vunpack.c.l.b16 %v423
        %v790 = vunpack.c.h.b16 %v423
        %v791 = vunpack.c.l.b16 %v424
        %v792 = vunpack.c.h.b16 %v424
        %v793 = vunpack.c.l.b16 %v425
        %v794 = vunpack.c.h.b16 %v425
        %v795 = vunpack.c.l.b16 %v426
        %v796 = vunpack.c.h.b16 %v426
        %v797 = vunpack.c.l.b16 %v427
        %v798 = vunpack.c.h.b16 %v427
        %v799 = vunpack.c.l.b16 %v428
        %v800 = vunpack.c.h.b16 %v428
        %v801 = vunpack.c.l.b16 %v429
        %v802 = vunpack.c.h.b16 %v429
        %v803 = vunpack.c.l.b16 %v430
        %v804 = vunpack.c.h.b16 %v430
        %v805 = vunpack.c.l.b16 %v431
        %v806 = vunpack.c.h.b16 %v431
        %v807 = vunpack.c.l.b16 %v432
        %v808 = vunpack.c.h.b16 %v432
        %v809 = vunpack.c.l.b16 %v433
        %v810 = vunpack.c.h.b16 %v433
        %v811 = vunpack.c.l.b16 %v434
        %v812 = vunpack.c.h.b16 %v434
        %v813 = vunpack.c.l.b16 %v435
        %v814 = vunpack.c.h.b16 %v435
        %v815 = vunpack.c.l.b16 %v436
        %v816 = vunpack.c.h.b16 %v436
        %v817 = vunpack.c.l.b16 %v437
        %v818 = vunpack.c.h.b16 %v437
        %v819 = vunpack.c.l.b16 %v438
        %v820 = vunpack.c.h.b16 %v438
        %v821 = vunpack.c.l.b16 %v439
        %v822 = vunpack.c.h.b16 %v439
        %v823 = vunpack.c.l.b16 %v440
        %v824 = vunpack.c.h.b16 %v440
        %v825 = vunpack.c.l.b16 %v441
        %v826 = vunpack.c.h.b16 %v441
        %v827 = vunpack.c.l.b16 %v442
        %v828 = vunpack.c.h.b16 %v442
        %v829 = vunpack.c.l.b16 %v443
        %v830 = vunpack.c.h.b16 %v443
        %v831 = vunpack.c.l.b16 %v444
        %v832 = vunpack.c.h.b16 %v444
        %v833 = vunpack.c.l.b16 %v445
        %v834 = vunpack.c.h.b16 %v445
        %v835 = vunpack.c.l.b16 %v446
        %v836 = vunpack.c.h.b16 %v446
        %v837 = vunpack.c.l.b16 %v447
        %v838 = vunpack.c.h.b16 %v447
        %v839 = vunpack.c.l.b16 %v448
        %v840 = vunpack.c.h.b16 %v448
        %v841 = vunpack.c.l.b16 %v449
        %v842 = vunpack.c.h.b16 %v449
        %v843 = vunpack.c.l.b16 %v450
        %v844 = vunpack.c.h.b16 %v450
        %v845 = vpack.c.b16 %v593, %v589
        %v846 = vpack.c.b16 %v594, %v590
        %v847 = vpack.c.b16 %v595, %v591
        %v848 = vpack.c.b16 %v596, %v592
        %v849 = vpack.c.b16 %v601, %v597
        %v850 = vpack.c.b16 %v602, %v598
        %v851 = vpack.c.b16 %v603, %v599
        %v852 = vpack.c.b16 %v604, %v600
        %v853 = vpack.c.b16 %v609, %v605
        %v854 = vpack.c.b16 %v610, %v606
        %v855 = vpack.c.b16 %v611, %v607
        %v856 = vpack.c.b16 %v612, %v608
        %v857 = vpack.c.b16 %v617, %v613
        %v858 = vpack.c.b16 %v618, %v614
        %v859 = vpack.c.b16 %v619, %v615
        %v860 = vpack.c.b16 %v620, %v616
        %v861 = vpack.c.b16 %v625, %v621
        %v862 = vpack.c.b16 %v626, %v622
        %v863 = vpack.c.b16 %v627, %v623
        %v864 = vpack.c.b16 %v628, %v624
        %v865 = vpack.c.b16 %v633, %v629
        %v866 = vpack.c.b16 %v634, %v630
        %v867 = vpack.c.b16 %v635, %v631
        %v868 = vpack.c.b16 %v636, %v632
        %v869 = vpack.c.b16 %v641, %v637
        %v870 = vpack.c.b16 %v642, %v638
        %v871 = vpack.c.b16 %v643, %v639
        %v872 = vpack.c.b16 %v644, %v640
        %v873 = vpack.c.b16 %v649, %v645
        %v874 = vpack.c.b16 %v650, %v646
        %v875 = vpack.c.b16 %v651, %v647
        %v876 = vpack.c.b16 %v652, %v648
        %v877 = vpack.c.b16 %v657, %v653
        %v878 = vpack.c.b16 %v658, %v654
        %v879 = vpack.c.b16 %v659, %v655
        %v880 = vpack.c.b16 %v660, %v656
        %v881 = vpack.c.b16 %v665, %v661
        %v882 = vpack.c.b16 %v666, %v662
        %v883 = vpack.c.b16 %v667, %v663
        %v884 = vpack.c.b16 %v668, %v664
        %v885 = vpack.c.b16 %v673, %v669
        %v886 = vpack.c.b16 %v674, %v670
        %v887 = vpack.c.b16 %v675, %v671
        %v888 = vpack.c.b16 %v676, %v672
        %v889 = vpack.c.b16 %v681, %v677
        %v890 = vpack.c.b16 %v682, %v678
        %v891 = vpack.c.b16 %v683, %v679
        %v892 = vpack.c.b16 %v684, %v680
        %v893 = vpack.c.b16 %v689, %v685
        %v894 = vpack.c.b16 %v690, %v686
        %v895 = vpack.c.b16 %v691, %v687
        %v896 = vpack.c.b16 %v692, %v688
        %v897 = vpack.c.b16 %v697, %v693
        %v898 = vpack.c.b16 %v698, %v694
        %v899 = vpack.c.b16 %v699, %v695
        %v900 = vpack.c.b16 %v700, %v696
        %v901 = vpack.c.b16 %v705, %v701
        %v902 = vpack.c.b16 %v706, %v702
        %v903 = vpack.c.b16 %v707, %v703
        %v904 = vpack.c.b16 %v708, %v704
        %v905 = vpack.c.b16 %v713, %v709
        %v906 = vpack.c.b16 %v714, %v710
        %v907 = vpack.c.b16 %v715, %v711
        %v908 = vpack.c.b16 %v716, %v712
        %v909 = vpack.c.b16 %v721, %v717
        %v910 = vpack.c.b16 %v722, %v718
        %v911 = vpack.c.b16 %v723, %v719
        %v912 = vpack.c.b16 %v724, %v720
        %v913 = vpack.c.b16 %v729, %v725
        %v914 = vpack.c.b16 %v730, %v726
        %v915 = vpack.c.b16 %v731, %v727
        %v916 = vpack.c.b16 %v732, %v728
        %v917 = vpack.c.b16 %v737, %v733
        %v918 = vpack.c.b16 %v738, %v734
        %v919 = vpack.c.b16 %v739, %v735
        %v920 = vpack.c.b16 %v740, %v736
        %v921 = vpack.c.b16 %v745, %v741
        %v922 = vpack.c.b16 %v746, %v742
        %v923 = vpack.c.b16 %v747, %v743
        %v924 = vpack.c.b16 %v748, %v744
        %v925 = vpack.c.b16 %v753, %v749
        %v926 = vpack.c.b16 %v754, %v750
        %v927 = vpack.c.b16 %v755, %v751
        %v928 = vpack.c.b16 %v756, %v752
        %v929 = vpack.c.b16 %v761, %v757
        %v930 = vpack.c.b16 %v762, %v758
        %v931 = vpack.c.b16 %v763, %v759
        %v932 = vpack.c.b16 %v764, %v760
        %v933 = vpack.c.b16 %v769, %v765
        %v934 = vpack.c.b16 %v770, %v766
        %v935 = vpack.c.b16 %v771, %v767
        %v936 = vpack.c.b16 %v772, %v768
        %v937 = vpack.c.b16 %v777, %v773
        %v938 = vpack.c.b16 %v778, %v774
        %v939 = vpack.c.b16 %v779, %v775
        %v940 = vpack.c.b16 %v780, %v776
        %v941 = vpack.c.b16 %v785, %v781
        %v942 = vpack.c.b16 %v786, %v782
        %v943 = vpack.c.b16 %v787, %v783
        %v944 = vpack.c.b16 %v788, %v784
        %v945 = vpack.c.b16 %v793, %v789
        %v946 = vpack.c.b16 %v794, %v790
        %v947 = vpack.c.b16 %v795, %v791
        %v948 = vpack.c.b16 %v796, %v792
        %v949 = vpack.c.b16 %v801, %v797
        %v950 = vpack.c.b16 %v802, %v798
        %v951 = vpack.c.b16 %v803, %v799
        %v952 = vpack.c.b16 %v804, %v800
        %v953 = vpack.c.b16 %v809, %v805
        %v954 = vpack.c.b16 %v810, %v806
        %v955 = vpack.c.b16 %v811, %v807
        %v956 = vpack.c.b16 %v812, %v808
        %v957 = vpack.c.b16 %v817, %v813
        %v958 = vpack.c.b16 %v818, %v814
        %v959 = vpack.c.b16 %v819, %v815
        %v960 = vpack.c.b16 %v820, %v816
        %v961 = vpack.c.b16 %v825, %v821
        %v962 = vpack.c.b16 %v826, %v822
        %v963 = vpack.c.b16 %v827, %v823
        %v964 = vpack.c.b16 %v828, %v824
        %v965 = vpack.c.b16 %v833, %v829
        %v966 = vpack.c.b16 %v834, %v830
        %v967 = vpack.c.b16 %v835, %v831
        %v968 = vpack.c.b16 %v836, %v832
        %v969 = vpack.c.b16 %v841, %v837
        %v970 = vpack.c.b16 %v842, %v838
        %v971 = vpack.c.b16 %v843, %v839
        %v972 = vpack.c.b16 %v844, %v840
        %1101 = vmatpush.bf16.msra.mxu0 %v873
        %1102 = vmatpush.bf16.msra.mxu0 %v869
        %1103 = vmatpush.bf16.msra.mxu0 %v865
        %1104 = vmatpush.bf16.msra.mxu0 %v861
        %1105 = vmatpush.bf16.msra.mxu0 %v857
        %1106 = vmatpush.bf16.msra.mxu0 %v853
        %1107 = vmatpush.bf16.msra.mxu0 %v849
        %1108 = vmatpush.bf16.msra.mxu0 %v845
        %1109 = vmatmul.bf16.gmra.mxu0 %v319
        %v1110 = vpop.f32.mrf.mxu0
        %v1111 = vadd.f32 %v453, %v1110
        %v1112 = vpop.f32.mrf.mxu0
        %1113 = vdwg.mxu0
        %1114 = vmatpush.bf16.msra.mxu0 %v905
        %1115 = vmatpush.bf16.msra.mxu0 %v901
        %1116 = vmatpush.bf16.msra.mxu0 %v897
        %1117 = vmatpush.bf16.msra.mxu0 %v893
        %1118 = vmatpush.bf16.msra.mxu0 %v889
        %1119 = vmatpush.bf16.msra.mxu0 %v885
        %1120 = vmatpush.bf16.msra.mxu0 %v881
        %1121 = vmatpush.bf16.msra.mxu0 %v877
        %1122 = vmatmul.bf16.gmra.mxu0 %v320
        %v1123 = vpop.f32.mrf.mxu0
        %v1124 = vadd.f32 %v1111, %v1123
        %v1125 = vpop.f32.mrf.mxu0
        %1126 = vdwg.mxu0
        %1127 = vmatpush.bf16.msra.mxu0 %v937
        %1128 = vmatpush.bf16.msra.mxu0 %v933
        %1129 = vmatpush.bf16.msra.mxu0 %v929
        %1130 = vmatpush.bf16.msra.mxu0 %v925
        %1131 = vmatpush.bf16.msra.mxu0 %v921
        %1132 = vmatpush.bf16.msra.mxu0 %v917
        %1133 = vmatpush.bf16.msra.mxu0 %v913
        %1134 = vmatpush.bf16.msra.mxu0 %v909
        %1135 = vmatmul.bf16.gmra.mxu0 %v321
        %v1136 = vpop.f32.mrf.mxu0
        %v1137 = vadd.f32 %v1124, %v1136
        %v1138 = vpop.f32.mrf.mxu0
        %1139 = vdwg.mxu0
        %1140 = vmatpush.bf16.msra.mxu0 %v969
        %1141 = vmatpush.bf16.msra.mxu0 %v965
        %1142 = vmatpush.bf16.msra.mxu0 %v961
        %1143 = vmatpush.bf16.msra.mxu0 %v957
        %1144 = vmatpush.bf16.msra.mxu0 %v953
        %1145 = vmatpush.bf16.msra.mxu0 %v949
        %1146 = vmatpush.bf16.msra.mxu0 %v945
        %1147 = vmatpush.bf16.msra.mxu0 %v941
        %1148 = vmatmul.bf16.gmra.mxu0 %v322
        %v1149 = vpop.f32.mrf.mxu0
        %v1150 = vadd.f32 %v1137, %v1149
        %v1151 = vpop.f32.mrf.mxu0
        %1152 = vdwg.mxu0
        %1153 = vmatpush.bf16.msra.mxu0 %v874
        %1154 = vmatpush.bf16.msra.mxu0 %v870
        %1155 = vmatpush.bf16.msra.mxu0 %v866
        %1156 = vmatpush.bf16.msra.mxu0 %v862
        %1157 = vmatpush.bf16.msra.mxu0 %v858
        %1158 = vmatpush.bf16.msra.mxu0 %v854
        %1159 = vmatpush.bf16.msra.mxu0 %v850
        %1160 = vmatpush.bf16.msra.mxu0 %v846
        %1161 = vmatmul.bf16.gmra.mxu0 %v319
        %v1162 = vpop.f32.mrf.mxu0
        %v1163 = vadd.f32 %v454, %v1162
        %v1164 = vpop.f32.mrf.mxu0
        %1165 = vdwg.mxu0
        %1166 = vmatpush.bf16.msra.mxu0 %v906
        %1167 = vmatpush.bf16.msra.mxu0 %v902
        %1168 = vmatpush.bf16.msra.mxu0 %v898
        %1169 = vmatpush.bf16.msra.mxu0 %v894
        %1170 = vmatpush.bf16.msra.mxu0 %v890
        %1171 = vmatpush.bf16.msra.mxu0 %v886
        %1172 = vmatpush.bf16.msra.mxu0 %v882
        %1173 = vmatpush.bf16.msra.mxu0 %v878
        %1174 = vmatmul.bf16.gmra.mxu0 %v320
        %v1175 = vpop.f32.mrf.mxu0
        %v1176 = vadd.f32 %v1163, %v1175
        %v1177 = vpop.f32.mrf.mxu0
        %1178 = vdwg.mxu0
        %1179 = vmatpush.bf16.msra.mxu0 %v938
        %1180 = vmatpush.bf16.msra.mxu0 %v934
        %1181 = vmatpush.bf16.msra.mxu0 %v930
        %1182 = vmatpush.bf16.msra.mxu0 %v926
        %1183 = vmatpush.bf16.msra.mxu0 %v922
        %1184 = vmatpush.bf16.msra.mxu0 %v918
        %1185 = vmatpush.bf16.msra.mxu0 %v914
        %1186 = vmatpush.bf16.msra.mxu0 %v910
        %1187 = vmatmul.bf16.gmra.mxu0 %v321
        %v1188 = vpop.f32.mrf.mxu0
        %v1189 = vadd.f32 %v1176, %v1188
        %v1190 = vpop.f32.mrf.mxu0
        %1191 = vdwg.mxu0
        %1192 = vmatpush.bf16.msra.mxu0 %v970
        %1193 = vmatpush.bf16.msra.mxu0 %v966
        %1194 = vmatpush.bf16.msra.mxu0 %v962
        %1195 = vmatpush.bf16.msra.mxu0 %v958
        %1196 = vmatpush.bf16.msra.mxu0 %v954
        %1197 = vmatpush.bf16.msra.mxu0 %v950
        %1198 = vmatpush.bf16.msra.mxu0 %v946
        %1199 = vmatpush.bf16.msra.mxu0 %v942
        %1200 = vmatmul.bf16.gmra.mxu0 %v322
        %v1201 = vpop.f32.mrf.mxu0
        %v1202 = vadd.f32 %v1189, %v1201
        %v1203 = vpop.f32.mrf.mxu0
        %1204 = vdwg.mxu0
        %1205 = vmatpush.bf16.msra.mxu0 %v875
        %1206 = vmatpush.bf16.msra.mxu0 %v871
        %1207 = vmatpush.bf16.msra.mxu0 %v867
        %1208 = vmatpush.bf16.msra.mxu0 %v863
        %1209 = vmatpush.bf16.msra.mxu0 %v859
        %1210 = vmatpush.bf16.msra.mxu0 %v855
        %1211 = vmatpush.bf16.msra.mxu0 %v851
        %1212 = vmatpush.bf16.msra.mxu0 %v847
        %1213 = vmatmul.bf16.gmra.mxu0 %v319
        %v1214 = vpop.f32.mrf.mxu0
        %v1215 = vadd.f32 %v455, %v1214
        %v1216 = vpop.f32.mrf.mxu0
        %1217 = vdwg.mxu0
        %1218 = vmatpush.bf16.msra.mxu0 %v907
        %1219 = vmatpush.bf16.msra.mxu0 %v903
        %1220 = vmatpush.bf16.msra.mxu0 %v899
        %1221 = vmatpush.bf16.msra.mxu0 %v895
        %1222 = vmatpush.bf16.msra.mxu0 %v891
        %1223 = vmatpush.bf16.msra.mxu0 %v887
        %1224 = vmatpush.bf16.msra.mxu0 %v883
        %1225 = vmatpush.bf16.msra.mxu0 %v879
        %1226 = vmatmul.bf16.gmra.mxu0 %v320
        %v1227 = vpop.f32.mrf.mxu0
        %v1228 = vadd.f32 %v1215, %v1227
        %v1229 = vpop.f32.mrf.mxu0
        %1230 = vdwg.mxu0
        %1231 = vmatpush.bf16.msra.mxu0 %v939
        %1232 = vmatpush.bf16.msra.mxu0 %v935
        %1233 = vmatpush.bf16.msra.mxu0 %v931
        %1234 = vmatpush.bf16.msra.mxu0 %v927
        %1235 = vmatpush.bf16.msra.mxu0 %v923
        %1236 = vmatpush.bf16.msra.mxu0 %v919
        %1237 = vmatpush.bf16.msra.mxu0 %v915
        %1238 = vmatpush.bf16.msra.mxu0 %v911
        %1239 = vmatmul.bf16.gmra.mxu0 %v321
        %v1240 = vpop.f32.mrf.mxu0
        %v1241 = vadd.f32 %v1228, %v1240
        %v1242 = vpop.f32.mrf.mxu0
        %1243 = vdwg.mxu0
        %1244 = vmatpush.bf16.msra.mxu0 %v971
        %1245 = vmatpush.bf16.msra.mxu0 %v967
        %1246 = vmatpush.bf16.msra.mxu0 %v963
        %1247 = vmatpush.bf16.msra.mxu0 %v959
        %1248 = vmatpush.bf16.msra.mxu0 %v955
        %1249 = vmatpush.bf16.msra.mxu0 %v951
        %1250 = vmatpush.bf16.msra.mxu0 %v947
        %1251 = vmatpush.bf16.msra.mxu0 %v943
        %1252 = vmatmul.bf16.gmra.mxu0 %v322
        %v1253 = vpop.f32.mrf.mxu0
        %v1254 = vadd.f32 %v1241, %v1253
        %v1255 = vpop.f32.mrf.mxu0
        %1256 = vdwg.mxu0
        %1257 = vmatpush.bf16.msra.mxu0 %v876
        %1258 = vmatpush.bf16.msra.mxu0 %v872
        %1259 = vmatpush.bf16.msra.mxu0 %v868
        %1260 = vmatpush.bf16.msra.mxu0 %v864
        %1261 = vmatpush.bf16.msra.mxu0 %v860
        %1262 = vmatpush.bf16.msra.mxu0 %v856
        %1263 = vmatpush.bf16.msra.mxu0 %v852
        %1264 = vmatpush.bf16.msra.mxu0 %v848
        %1265 = vmatmul.bf16.gmra.mxu0 %v319
        %v1266 = vpop.f32.mrf.mxu0
        %v1267 = vadd.f32 %v456, %v1266
        %v1268 = vpop.f32.mrf.mxu0
        %1269 = vdwg.mxu0
        %1270 = vmatpush.bf16.msra.mxu0 %v908
        %1271 = vmatpush.bf16.msra.mxu0 %v904
        %1272 = vmatpush.bf16.msra.mxu0 %v900
        %1273 = vmatpush.bf16.msra.mxu0 %v896
        %1274 = vmatpush.bf16.msra.mxu0 %v892
        %1275 = vmatpush.bf16.msra.mxu0 %v888
        %1276 = vmatpush.bf16.msra.mxu0 %v884
        %1277 = vmatpush.bf16.msra.mxu0 %v880
        %1278 = vmatmul.bf16.gmra.mxu0 %v320
        %v1279 = vpop.f32.mrf.mxu0
        %v1280 = vadd.f32 %v1267, %v1279
        %v1281 = vpop.f32.mrf.mxu0
        %1282 = vdwg.mxu0
        %1283 = vmatpush.bf16.msra.mxu0 %v940
        %1284 = vmatpush.bf16.msra.mxu0 %v936
        %1285 = vmatpush.bf16.msra.mxu0 %v932
        %1286 = vmatpush.bf16.msra.mxu0 %v928
        %1287 = vmatpush.bf16.msra.mxu0 %v924
        %1288 = vmatpush.bf16.msra.mxu0 %v920
        %1289 = vmatpush.bf16.msra.mxu0 %v916
        %1290 = vmatpush.bf16.msra.mxu0 %v912
        %1291 = vmatmul.bf16.gmra.mxu0 %v321
        %v1292 = vpop.f32.mrf.mxu0
        %v1293 = vadd.f32 %v1280, %v1292
        %v1294 = vpop.f32.mrf.mxu0
        %1295 = vdwg.mxu0
        %1296 = vmatpush.bf16.msra.mxu0 %v972
        %1297 = vmatpush.bf16.msra.mxu0 %v968
        %1298 = vmatpush.bf16.msra.mxu0 %v964
        %1299 = vmatpush.bf16.msra.mxu0 %v960
        %1300 = vmatpush.bf16.msra.mxu0 %v956
        %1301 = vmatpush.bf16.msra.mxu0 %v952
        %1302 = vmatpush.bf16.msra.mxu0 %v948
        %1303 = vmatpush.bf16.msra.mxu0 %v944
        %1304 = vmatmul.bf16.gmra.mxu0 %v322
        %v1305 = vpop.f32.mrf.mxu0
        %v1306 = vadd.f32 %v1293, %v1305
        %v1307 = vpop.f32.mrf.mxu0
        %1308 = vdwg.mxu0
        %v1309 = vmax.f32 %v1150, 0.0
        %v1310 = vmax.f32 %v1202, 0.0
        %v1311 = vmax.f32 %v1254, 0.0
        %v1312 = vmax.f32 %v1306, 0.0
        %v1313 = vld [vmem:[#allocation2] sm:$0xf]
        %v1314 = vrot.slane %v1309, 4
        %v1315 = vadd.f32 %v1309, %v1314
        %v1316 = vrot.slane %v1315, 2
        %v1317 = vadd.f32 %v1315, %v1316
        %v1318 = vrot.slane %v1317, 1
        %v1319 = vadd.f32 %v1317, %v1318
        %v1320 = vrot.slane %v1310, 4
        %v1321 = vadd.f32 %v1310, %v1320
        %v1322 = vrot.slane %v1321, 2
        %v1323 = vadd.f32 %v1321, %v1322
        %v1324 = vrot.slane %v1323, 1
        %v1325 = vadd.f32 %v1323, %v1324
        %v1326 = vrot.slane %v1311, 4
        %v1327 = vadd.f32 %v1311, %v1326
        %v1328 = vrot.slane %v1327, 2
        %v1329 = vadd.f32 %v1327, %v1328
        %v1330 = vrot.slane %v1329, 1
        %v1331 = vadd.f32 %v1329, %v1330
        %v1332 = vrot.slane %v1312, 4
        %v1333 = vadd.f32 %v1312, %v1332
        %v1334 = vrot.slane %v1333, 2
        %v1335 = vadd.f32 %v1333, %v1334
        %v1336 = vrot.slane %v1335, 1
        %v1337 = vadd.f32 %v1335, %v1336
        %v1342 = vrot.slane %v1325, 7
        %v1343 = vrot.slane %v1331, 6
        %v1344 = vrot.slane %v1337, 5
        %vm1345 = vcmask 1040384
        %v1346 = vsel %vm1345, %v1319, %v1342
        %vm1347 = vcmask 1042434
        %v1348 = vsel %vm1347, %v1343, %v1344
        %vm1349 = vcmask 1041408
        %v1350 = vsel %vm1349, %v1346, %v1348
        %v1352 = vadd.f32 %v1313, %v1350
        %v1353 = vlaneseq
        %vm1354 = vcmp.ge.s32.totalorder %v1353, 0
        %vm1355 = vcmp.lt.s32.totalorder %v1353, 512
        %vm1356 = vmand %vm1354, %vm1355
        %1357 = vst.msk [vmem:[#allocation2] sm:$0xf] %vm1356, %v1352
        // Predicated region
        $region61: #{tpu_custom_call.1} parent=39 // pred_check
          %p1358 = pneg %p306
        $region62: #{tpu_custom_call.1} parent=39 // pred_check_branch
          %1360 = sbr.rel (%p1358) target = $region64
        $region63: #{tpu_custom_call.1} parent=39 // pred_region
          %v1361 = vld [vmem:[#allocation2] sm:$0xf]
          %v1362 = vld [vmem:[#allocation9] sm:$0xff]
          %v1363 = vld [vmem:[#allocation9 + $0x8] sm:$0xff]
          %v1364 = vld [vmem:[#allocation9 + $0x10] sm:$0xff]
          %v1365 = vld [vmem:[#allocation9 + $0x18] sm:$0xff]
          %v1366 = vld [vmem:[#allocation9 + $0x20] sm:$0xff]
          %v1367 = vld [vmem:[#allocation9 + $0x28] sm:$0xff]
          %v1368 = vld [vmem:[#allocation9 + $0x30] sm:$0xff]
          %v1369 = vld [vmem:[#allocation9 + $0x38] sm:$0xff]
          %v1370 = vld [vmem:[#allocation9 + $0x40] sm:$0xff]
          %v1371 = vld [vmem:[#allocation9 + $0x48] sm:$0xff]
          %v1372 = vld [vmem:[#allocation9 + $0x50] sm:$0xff]
          %v1373 = vld [vmem:[#allocation9 + $0x58] sm:$0xff]
          %v1374 = vld [vmem:[#allocation9 + $0x60] sm:$0xff]
          %v1375 = vld [vmem:[#allocation9 + $0x68] sm:$0xff]
          %v1376 = vld [vmem:[#allocation9 + $0x70] sm:$0xff]
          %v1377 = vld [vmem:[#allocation9 + $0x78] sm:$0xff]
          %v1378 = vld [vmem:[#allocation9 + $0x80] sm:$0xff]
          %v1379 = vld [vmem:[#allocation9 + $0x88] sm:$0xff]
          %v1380 = vld [vmem:[#allocation9 + $0x90] sm:$0xff]
          %v1381 = vld [vmem:[#allocation9 + $0x98] sm:$0xff]
          %v1382 = vld [vmem:[#allocation9 + $0xa0] sm:$0xff]
          %v1383 = vld [vmem:[#allocation9 + $0xa8] sm:$0xff]
          %v1384 = vld [vmem:[#allocation9 + $0xb0] sm:$0xff]
          %v1385 = vld [vmem:[#allocation9 + $0xb8] sm:$0xff]
          %v1386 = vld [vmem:[#allocation9 + $0xc0] sm:$0xff]
          %v1387 = vld [vmem:[#allocation9 + $0xc8] sm:$0xff]
          %v1388 = vld [vmem:[#allocation9 + $0xd0] sm:$0xff]
          %v1389 = vld [vmem:[#allocation9 + $0xd8] sm:$0xff]
          %v1390 = vld [vmem:[#allocation9 + $0xe0] sm:$0xff]
          %v1391 = vld [vmem:[#allocation9 + $0xe8] sm:$0xff]
          %v1392 = vld [vmem:[#allocation9 + $0xf0] sm:$0xff]
          %v1393 = vld [vmem:[#allocation9 + $0xf8] sm:$0xff]
          %v1394 = vld [vmem:[#allocation9 + $0x100] sm:$0xff]
          %v1395 = vld [vmem:[#allocation9 + $0x108] sm:$0xff]
          %v1396 = vld [vmem:[#allocation9 + $0x110] sm:$0xff]
          %v1397 = vld [vmem:[#allocation9 + $0x118] sm:$0xff]
          %v1398 = vld [vmem:[#allocation9 + $0x120] sm:$0xff]
          %v1399 = vld [vmem:[#allocation9 + $0x128] sm:$0xff]
          %v1400 = vld [vmem:[#allocation9 + $0x130] sm:$0xff]
          %v1401 = vld [vmem:[#allocation9 + $0x138] sm:$0xff]
          %v1402 = vld [vmem:[#allocation9 + $0x140] sm:$0xff]
          %v1403 = vld [vmem:[#allocation9 + $0x148] sm:$0xff]
          %v1404 = vld [vmem:[#allocation9 + $0x150] sm:$0xff]
          %v1405 = vld [vmem:[#allocation9 + $0x158] sm:$0xff]
          %v1406 = vld [vmem:[#allocation9 + $0x160] sm:$0xff]
          %v1407 = vld [vmem:[#allocation9 + $0x168] sm:$0xff]
          %v1408 = vld [vmem:[#allocation9 + $0x170] sm:$0xff]
          %v1409 = vld [vmem:[#allocation9 + $0x178] sm:$0xff]
          %v1410 = vld [vmem:[#allocation9 + $0x180] sm:$0xff]
          %v1411 = vld [vmem:[#allocation9 + $0x188] sm:$0xff]
          %v1412 = vld [vmem:[#allocation9 + $0x190] sm:$0xff]
          %v1413 = vld [vmem:[#allocation9 + $0x198] sm:$0xff]
          %v1414 = vld [vmem:[#allocation9 + $0x1a0] sm:$0xff]
          %v1415 = vld [vmem:[#allocation9 + $0x1a8] sm:$0xff]
          %v1416 = vld [vmem:[#allocation9 + $0x1b0] sm:$0xff]
          %v1417 = vld [vmem:[#allocation9 + $0x1b8] sm:$0xff]
          %v1418 = vld [vmem:[#allocation9 + $0x1c0] sm:$0xff]
          %v1419 = vld [vmem:[#allocation9 + $0x1c8] sm:$0xff]
          %v1420 = vld [vmem:[#allocation9 + $0x1d0] sm:$0xff]
          %v1421 = vld [vmem:[#allocation9 + $0x1d8] sm:$0xff]
          %v1422 = vld [vmem:[#allocation9 + $0x1e0] sm:$0xff]
          %v1423 = vld [vmem:[#allocation9 + $0x1e8] sm:$0xff]
          %v1424 = vld [vmem:[#allocation9 + $0x1f0] sm:$0xff]
          %v1425 = vld [vmem:[#allocation9 + $0x1f8] sm:$0xff]
          %v1426 = vld [vmem:[%s4] sm:$0x1]
          %v1428 = vperm.slane %v1361, 0
          %v1429 = vperm.slane %v1361, 1
          %v1430 = vperm.slane %v1361, 2
          %v1431 = vperm.slane %v1361, 3
          %1436 = vmatpush.msra.mxu0 %v1377
          %1437 = vmatpush.msra.mxu0 %v1376
          %1438 = vmatpush.msra.mxu0 %v1375
          %1439 = vmatpush.msra.mxu0 %v1374
          %1440 = vmatpush.msra.mxu0 %v1373
          %1441 = vmatpush.msra.mxu0 %v1372
          %1442 = vmatpush.msra.mxu0 %v1371
          %1443 = vmatpush.msra.mxu0 %v1370
          %1444 = vmatpush.msra.mxu0 %v1369
          %1445 = vmatpush.msra.mxu0 %v1368
          %1446 = vmatpush.msra.mxu0 %v1367
          %1447 = vmatpush.msra.mxu0 %v1366
          %1448 = vmatpush.msra.mxu0 %v1365
          %1449 = vmatpush.msra.mxu0 %v1364
          %1450 = vmatpush.msra.mxu0 %v1363
          %1451 = vmatpush.msra.mxu0 %v1362
          %1452 = vmatmul.f32.gmra.mxu0 %v1428
          %v1453 = vpop.f32.mrf.mxu0
          %v1454 = vadd.f32 %v1426, %v1453
          %1455 = vdwg.mxu0
          %1456 = vmatpush.msra.mxu0 %v1393
          %1457 = vmatpush.msra.mxu0 %v1392
          %1458 = vmatpush.msra.mxu0 %v1391
          %1459 = vmatpush.msra.mxu0 %v1390
          %1460 = vmatpush.msra.mxu0 %v1389
          %1461 = vmatpush.msra.mxu0 %v1388
          %1462 = vmatpush.msra.mxu0 %v1387
          %1463 = vmatpush.msra.mxu0 %v1386
          %1464 = vmatpush.msra.mxu0 %v1385
          %1465 = vmatpush.msra.mxu0 %v1384
          %1466 = vmatpush.msra.mxu0 %v1383
          %1467 = vmatpush.msra.mxu0 %v1382
          %1468 = vmatpush.msra.mxu0 %v1381
          %1469 = vmatpush.msra.mxu0 %v1380
          %1470 = vmatpush.msra.mxu0 %v1379
          %1471 = vmatpush.msra.mxu0 %v1378
          %1472 = vmatmul.f32.gmra.mxu0 %v1429
          %v1473 = vpop.f32.mrf.mxu0
          %v1474 = vadd.f32 %v1454, %v1473
          %1475 = vdwg.mxu0
          %1476 = vmatpush.msra.mxu0 %v1409
          %1477 = vmatpush.msra.mxu0 %v1408
          %1478 = vmatpush.msra.mxu0 %v1407
          %1479 = vmatpush.msra.mxu0 %v1406
          %1480 = vmatpush.msra.mxu0 %v1405
          %1481 = vmatpush.msra.mxu0 %v1404
          %1482 = vmatpush.msra.mxu0 %v1403
          %1483 = vmatpush.msra.mxu0 %v1402
          %1484 = vmatpush.msra.mxu0 %v1401
          %1485 = vmatpush.msra.mxu0 %v1400
          %1486 = vmatpush.msra.mxu0 %v1399
          %1487 = vmatpush.msra.mxu0 %v1398
          %1488 = vmatpush.msra.mxu0 %v1397
          %1489 = vmatpush.msra.mxu0 %v1396
          %1490 = vmatpush.msra.mxu0 %v1395
          %1491 = vmatpush.msra.mxu0 %v1394
          %1492 = vmatmul.f32.gmra.mxu0 %v1430
          %v1493 = vpop.f32.mrf.mxu0
          %v1494 = vadd.f32 %v1474, %v1493
          %1495 = vdwg.mxu0
          %1496 = vmatpush.msra.mxu0 %v1425
          %1497 = vmatpush.msra.mxu0 %v1424
          %1498 = vmatpush.msra.mxu0 %v1423
          %1499 = vmatpush.msra.mxu0 %v1422
          %1500 = vmatpush.msra.mxu0 %v1421
          %1501 = vmatpush.msra.mxu0 %v1420
          %1502 = vmatpush.msra.mxu0 %v1419
          %1503 = vmatpush.msra.mxu0 %v1418
          %1504 = vmatpush.msra.mxu0 %v1417
          %1505 = vmatpush.msra.mxu0 %v1416
          %1506 = vmatpush.msra.mxu0 %v1415
          %1507 = vmatpush.msra.mxu0 %v1414
          %1508 = vmatpush.msra.mxu0 %v1413
          %1509 = vmatpush.msra.mxu0 %v1412
          %1510 = vmatpush.msra.mxu0 %v1411
          %1511 = vmatpush.msra.mxu0 %v1410
          %1512 = vmatmul.f32.gmra.mxu0 %v1431
          %v1513 = vpop.f32.mrf.mxu0
          %v1514 = vadd.f32 %v1494, %v1513
          %1515 = vdwg.mxu0
          %1516 = vst [vmem:[%s305] sm:$0x1] %v1514
        $region64: #{tpu_custom_call.1} parent=39 // pred_fallthru
          _
        %s1517 = sand.u32 %s156, 1
        %s1518 = scalar_lea.sflag [#allocation5], %s1517
        %s1519 = sand.u32 %s156, 1
        %s1520 = scalar_lea.vmem [#allocation11], %s1519
        // Predicated region
        $region65: #{tpu_custom_call.1} parent=39 // pred_check
          %p1521 = pneg %p166
        $region66: #{tpu_custom_call.1} parent=39 // pred_check_branch
          %1523 = sbr.rel (%p1521) target = $region68
        $region67: #{tpu_custom_call.1} parent=39 // pred_region
          %1525 = vsyncadd %s1518, 0
          %s1526 = scalar_lea.hbm %s5, %s28
          %s1528 = sshll.u32 %s1520, 4
          %s1529 = int_to_ptr.vmem [resolvable:$true] %s1528
          %s1530 = sshll.u32 %s1526, 4
          %s1531 = int_to_ptr.hbm [resolvable:$true] %s1530
          %1533 = dma.vmem_to_hbm [thread:$0]  %s1529, 16, %s1531, %s1518
        $region68: #{tpu_custom_call.1} parent=39 // pred_fallthru
          _
      $region40: #{tpu_custom_call.1} parent=5 // pred_fallthru
        _
      %p1534 = scmp.le.s32.totalorder 2, %s19
      // Predicated region
      $region69: #{tpu_custom_call.1} parent=5 // pred_check
        %p1535 = pneg %p1534
      $region70: #{tpu_custom_call.1} parent=5 // pred_check_branch
        %1537 = sbr.rel (%p1535) target = $region72
      $region71: #{tpu_custom_call.1} parent=5 // pred_region
        %s1538 = ssub.s32 %s19, 2
        // Predicated region
        $region73: #{tpu_custom_call.1} parent=71 // pred_check
          %p1539 = pneg %p172
        $region74: #{tpu_custom_call.1} parent=71 // pred_check_branch
          %1541 = sbr.rel (%p1539) target = $region76
        $region75: #{tpu_custom_call.1} parent=71 // pred_region
          %s1542 = sand.u32 %s157, 1
          %s1543 = scalar_lea.sflag [#allocation5], %s1542
          %s1544 = sand.u32 %s157, 1
          %s1545 = scalar_lea.vmem [#allocation11], %s1544
          %1547 = dma.done %s1543, 16
        $region76: #{tpu_custom_call.1} parent=71 // pred_fallthru
          _
      $region72: #{tpu_custom_call.1} parent=5 // pred_fallthru
        _
    $region6: #{tpu_custom_call.1} parent=1 // loop_footer
      %s23 = sadd.s32 1, %s19
    $region7: #{tpu_custom_call.1} parent=1 // loop_footer_branch
      %18 = sbr.rel target = $region3
    $region8: #{tpu_custom_call.1} parent=1 // loop_exit
      _
    %1548 = vsyncpa [#allocation4], 1
    %s1549 = scalar_lea.sflag [#allocation4], 1
    %1550 = vsyncpa %s1549, 1
    %1551 = vsyncpa [#allocation7], 1
    %1552 = vsyncpa [#allocation10], 1
    %1553 = vsyncpa [#allocation5], 1
    %s1554 = scalar_lea.sflag [#allocation5], 1
    %1555 = vsyncpa %s1554, 1

</llo_original>
